<compile_context>
chip_gen: v7x
topology: tpu7x:2x2x1
jax: 0.10.0
libtpu: 0.0.40
codegen_flags: <defaults>
</compile_context>

<pallas_src>
import functools

import jax
import jax.numpy as jnp
import numpy as np
from jax.experimental import pallas as pl
from jax.experimental.pallas import tpu as pltpu


def _p6p7_fused_kernel(x_ref, w6_ref, b6_ref, w7_ref, b7_ref,
                       p6_ref, p7_ref, xpad_ref, p6pad_ref,
                       *, h, w, cin, cout):
    """One batch element: p6 = conv3x3/s2(x); p7 = conv3x3/s2(relu(p6)).

    x_ref   : (1, H, W, Cin)       bf16 activations
    w6_ref  : (9*Cin, Cout)        bf16 taps flattened (ky, kx, cin) row-major
    b6_ref  : (1, Cout)            f32
    w7_ref  : (9*Cout, Cout)       bf16
    b7_ref  : (1, Cout)            f32
    p6_ref  : (1, Ho, Wo, Cout)    f32 output
    p7_ref  : (1, Ho2, Wo2, Cout)  f32 output
    xpad_ref  : (H+2, W+2, Cin)    f32 VMEM scratch (zero-padded x)
    p6pad_ref : (Ho+2, Wo+2, Cout) f32 VMEM scratch (zero-padded relu(p6))
    """
    ho, wo = (h + 1) // 2, (w + 1) // 2        # PyTorch: floor((H-1)/2)+1
    ho2, wo2 = (ho + 1) // 2, (wo + 1) // 2
    hp, wp = h + 2, w + 2
    hq, wq = ho + 2, wo + 2

    def pad_into(pad_ref, interior, ph, pw, c):
        # Zero halo (pad=1) + interior.  The border is rewritten every grid
        # step, so no state is carried across iterations (megacore-safe).
        zrow = jnp.zeros((1, pw, c), jnp.float32)
        zcol = jnp.zeros((ph, 1, c), jnp.float32)
        pad_ref[0:1, :, :] = zrow
        pad_ref[ph - 1:ph, :, :] = zrow
        pad_ref[:, 0:1, :] = zcol
        pad_ref[:, pw - 1:pw, :] = zcol
        pad_ref[1:ph - 1, 1:pw - 1, :] = interior

    def conv3x3_s2(pad_ref, w_ref, b_ref, oh, ow, c):
        # im2col: 9 strided tap loads -> one (oh*ow, 9*c) x (9*c, cout) matmul
        # on the MXU with bf16 operands and f32 accumulation.
        taps = []
        for ky in range(3):
            for kx in range(3):
                t = pad_ref[pl.ds(ky, oh, stride=2), pl.ds(kx, ow, stride=2), :]
                taps.append(t.reshape(oh * ow, c))
        patches = jnp.concatenate(taps, axis=1).astype(jnp.bfloat16)
        acc = jnp.dot(patches, w_ref[...], preferred_element_type=jnp.float32)
        return acc + b_ref[...]                      # (oh*ow, cout) f32

    # ---- p6 = conv3x3/s2(x) ------------------------------------------------
    pad_into(xpad_ref, x_ref[0].astype(jnp.float32), hp, wp, cin)
    p6 = conv3x3_s2(xpad_ref, w6_ref, b6_ref, ho, wo, cin)
    p6_ref[...] = p6.reshape(1, ho, wo, cout).astype(p6_ref.dtype)

    # ---- p7 = conv3x3/s2(relu(p6)); p6 stays resident in VMEM ---------------
    pad_into(p6pad_ref, jnp.maximum(p6, 0.0).reshape(ho, wo, cout), hq, wq, cout)
    p7 = conv3x3_s2(p6pad_ref, w7_ref, b7_ref, ho2, wo2, cout)
    p7_ref[...] = p7.reshape(1, ho2, wo2, cout).astype(p7_ref.dtype)


def last_level_p6p7_pallas(x_nchw, w6_hwio, b6, w7_hwio, b7):
    """Fused P6/P7 head. x_nchw: (N, Cin, H, W) f32. Returns [p6, p7] in NCHW."""
    n, cin, h, w = x_nchw.shape
    cout = w6_hwio.shape[-1]
    ho, wo = (h + 1) // 2, (w + 1) // 2
    ho2, wo2 = (ho + 1) // 2, (wo + 1) // 2

    # NCHW -> NHWC with the bf16 cast fused in (halves the activation DMA).
    x = jnp.transpose(x_nchw, (0, 2, 3, 1)).astype(jnp.bfloat16)
    w6f = w6_hwio.reshape(9 * cin, cout).astype(jnp.bfloat16)    # (ky,kx,cin) rows
    w7f = w7_hwio.reshape(9 * cout, cout).astype(jnp.bfloat16)
    b6f = b6.reshape(1, cout).astype(jnp.float32)
    b7f = b7.reshape(1, cout).astype(jnp.float32)

    kernel = functools.partial(_p6p7_fused_kernel, h=h, w=w, cin=cin, cout=cout)

    p6, p7 = pl.pallas_call(
        kernel,
        out_shape=(jax.ShapeDtypeStruct((n, ho, wo, cout), jnp.float32),
                   jax.ShapeDtypeStruct((n, ho2, wo2, cout), jnp.float32)),
        grid=(n,),
        in_specs=[
            pl.BlockSpec((1, h, w, cin), lambda i: (i, 0, 0, 0)),
            pl.BlockSpec((9 * cin, cout), lambda i: (0, 0)),
            pl.BlockSpec((1, cout), lambda i: (0, 0)),
            pl.BlockSpec((9 * cout, cout), lambda i: (0, 0)),
            pl.BlockSpec((1, cout), lambda i: (0, 0)),
        ],
        out_specs=(
            pl.BlockSpec((1, ho, wo, cout), lambda i: (i, 0, 0, 0)),
            pl.BlockSpec((1, ho2, wo2, cout), lambda i: (i, 0, 0, 0)),
        ),
        scratch_shapes=[
            pltpu.VMEM((h + 2, w + 2, cin), jnp.float32),
            pltpu.VMEM((ho + 2, wo + 2, cout), jnp.float32),
        ],
        compiler_params=pltpu.CompilerParams(
            dimension_semantics=("parallel",)),
    )(x, w6f, b6f, w7f, b7f)

    # NHWC -> NCHW to match the PyTorch module's output layout.
    return [jnp.transpose(p6, (0, 3, 1, 2)), jnp.transpose(p7, (0, 3, 1, 2))]


_last_level_p6p7_jit = jax.jit(last_level_p6p7_pallas)


class LastLevelP6P7Pallas:
    """JAX/Pallas port of LastLevelP6P7. Parameters built deterministically."""

    def __init__(self, in_channels, out_channels, key):
        k6w, k6b, k7w, k7b = jax.random.split(key, 4)
        # c2_xavier_fill ~ kaiming_uniform(fan_in); a deterministic init with
        # the right shapes suffices (synthetic weights, no checkpoint).
        fan6 = in_channels * 9
        fan7 = out_channels * 9
        self.w6 = jax.random.uniform(
            k6w, (3, 3, in_channels, out_channels), jnp.float32,
            -1.0 / np.sqrt(fan6), 1.0 / np.sqrt(fan6))   # HWIO
        self.b6 = jax.random.uniform(k6b, (out_channels,), jnp.float32, -0.1, 0.1)
        self.w7 = jax.random.uniform(
            k7w, (3, 3, out_channels, out_channels), jnp.float32,
            -1.0 / np.sqrt(fan7), 1.0 / np.sqrt(fan7))   # HWIO
        self.b7 = jax.random.uniform(k7b, (out_channels,), jnp.float32, -0.1, 0.1)

    def __call__(self, x_nchw):
        return _last_level_p6p7_jit(x_nchw, self.w6, self.b6, self.w7, self.b7)


# ----------------------------- verification ---------------------------------
def _conv_ref_nhwc(x_nhwc_f32, w_hwio_f32, b):
    y = jax.lax.conv_general_dilated(
        x_nhwc_f32, w_hwio_f32, window_strides=(2, 2),
        padding=((1, 1), (1, 1)),
        dimension_numbers=("NHWC", "HWIO", "NHWC"))
    return y + b


def _check_against_reference(module, x_nchw, p6, p7, atol=1e-4, rtol=1e-4):
    """Reference with the same bf16 input/weight quantization as the kernel."""
    f32, bf16 = jnp.float32, jnp.bfloat16
    xq = jnp.transpose(x_nchw, (0, 2, 3, 1)).astype(bf16).astype(f32)
    w6q = module.w6.astype(bf16).astype(f32)
    w7q = module.w7.astype(bf16).astype(f32)

    p6_ref = _conv_ref_nhwc(xq, w6q, module.b6)
    # conv2 is checked from the kernel's own p6 so independent bf16 rounding
    # of near-tie values cannot cascade into the comparison.
    p6_kernel_nhwc = jnp.transpose(p6, (0, 2, 3, 1))
    p7_in = jnp.maximum(p6_kernel_nhwc, 0.0).astype(bf16).astype(f32)
    p7_ref = _conv_ref_nhwc(p7_in, w7q, module.b7)

    np.testing.assert_allclose(
        np.asarray(p6), np.asarray(jnp.transpose(p6_ref, (0, 3, 1, 2))),
        atol=atol, rtol=rtol)
    np.testing.assert_allclose(
        np.asarray(p7), np.asarray(jnp.transpose(p7_ref, (0, 3, 1, 2))),
        atol=atol, rtol=rtol)


if __name__ == "__main__":
    key = jax.random.PRNGKey(0)
    kx, kp, kodd = jax.random.split(key, 3)

    # Small, lane-aligned FPN-like shapes (real FPN uses 256 channels).
    N, Cin, Cout, H, W = 2, 128, 128, 16, 16
    x = jax.random.normal(kx, (N, Cin, H, W), jnp.float32)   # NCHW like PyTorch

    module = LastLevelP6P7Pallas(Cin, Cout, kp)
    p6, p7 = module(x)
    jax.block_until_ready(p6)
    jax.block_until_ready(p7)

    assert p6.shape == (N, Cout, H // 2, W // 2)
    assert p7.shape == (N, Cout, H // 4, W // 4)
    _check_against_reference(module, x, p6, p7)

    # Odd spatial size: PyTorch's ceil output-size semantics (15 -> 8 -> 4).
    x_odd = jax.random.normal(kodd, (1, Cin, 15, 15), jnp.float32)
    q6, q7 = module(x_odd)
    jax.block_until_ready(q6)
    jax.block_until_ready(q7)
    assert q6.shape == (1, Cout, 8, 8)
    assert q7.shape == (1, Cout, 4, 4)
    _check_against_reference(module, x_odd, q6, q7)

    print("KERNEL_OK")
</pallas_src>

<mosaic_0001>
module attributes {stable_mosaic.version = 11 : i64} {
  func.func @_p6p7_fused_kernel(%arg0: i32, %arg1: memref<1x16x16x128xbf16, #tpu.memory_space<vmem>>, %arg2: memref<1152x128xbf16, #tpu.memory_space<vmem>>, %arg3: memref<1x128xf32, #tpu.memory_space<vmem>>, %arg4: memref<1152x128xbf16, #tpu.memory_space<vmem>>, %arg5: memref<1x128xf32, #tpu.memory_space<vmem>>, %arg6: memref<1x8x8x128xf32, #tpu.memory_space<vmem>>, %arg7: memref<1x4x4x128xf32, #tpu.memory_space<vmem>>, %arg8: memref<18x18x128xf32, #tpu.memory_space<vmem>>, %arg9: memref<10x10x128xf32, #tpu.memory_space<vmem>>) attributes {dimension_semantics = [#tpu.dimension_semantics<parallel>], iteration_bounds = array<i64: 2>, scalar_prefetch = 0 : i64, scratch_operands = 2 : i64, tpu.core_type = #tpu.core_type<tc>, window_params = [{transform_indices = @transform_0, window_bounds = array<i64: 1, 16, 16, 128>}, {pipeline_mode = #tpu.pipeline_mode<synchronous>, transform_indices = @transform_1, window_bounds = array<i64: 1152, 128>}, {pipeline_mode = #tpu.pipeline_mode<synchronous>, transform_indices = @transform_2, window_bounds = array<i64: 1, 128>}, {pipeline_mode = #tpu.pipeline_mode<synchronous>, transform_indices = @transform_3, window_bounds = array<i64: 1152, 128>}, {pipeline_mode = #tpu.pipeline_mode<synchronous>, transform_indices = @transform_4, window_bounds = array<i64: 1, 128>}, {transform_indices = @transform_5, window_bounds = array<i64: 1, 8, 8, 128>}, {transform_indices = @transform_6, window_bounds = array<i64: 1, 4, 4, 128>}]} {
    %c0 = arith.constant 0 : index
    %c0_0 = arith.constant 0 : index
    %c0_1 = arith.constant 0 : index
    %c0_2 = arith.constant 0 : index
    %0 = vector.load %arg1[%c0, %c0_0, %c0_1, %c0_2] : memref<1x16x16x128xbf16, #tpu.memory_space<vmem>>, vector<1x16x16x128xbf16>
    %1 = vector.shape_cast %0 : vector<1x16x16x128xbf16> to vector<16x16x128xbf16>
    %2 = arith.extf %1 : vector<16x16x128xbf16> to vector<16x16x128xf32>
    %cst = arith.constant 0.000000e+00 : f32
    %3 = vector.broadcast %cst : f32 to vector<1x18x128xf32>
    %cst_3 = arith.constant 0.000000e+00 : f32
    %4 = vector.broadcast %cst_3 : f32 to vector<18x1x128xf32>
    %c0_4 = arith.constant 0 : index
    %c0_5 = arith.constant 0 : index
    %c0_6 = arith.constant 0 : index
    %5 = vector.load %arg8[%c0_4, %c0_5, %c0_6] : memref<18x18x128xf32, #tpu.memory_space<vmem>>, vector<1x18x128xf32>
    tpu.vector_store %arg8[%c0_4, %c0_5, %c0_6], %3 {strides = array<i32>} : memref<18x18x128xf32, #tpu.memory_space<vmem>>, vector<1x18x128xf32>,
    %c17 = arith.constant 17 : index
    %c0_7 = arith.constant 0 : index
    %c0_8 = arith.constant 0 : index
    %6 = vector.load %arg8[%c17, %c0_7, %c0_8] : memref<18x18x128xf32, #tpu.memory_space<vmem>>, vector<1x18x128xf32>
    tpu.vector_store %arg8[%c17, %c0_7, %c0_8], %3 {strides = array<i32>} : memref<18x18x128xf32, #tpu.memory_space<vmem>>, vector<1x18x128xf32>,
    %c0_9 = arith.constant 0 : index
    %c0_10 = arith.constant 0 : index
    %c0_11 = arith.constant 0 : index
    %7 = vector.load %arg8[%c0_9, %c0_10, %c0_11] : memref<18x18x128xf32, #tpu.memory_space<vmem>>, vector<18x1x128xf32>
    tpu.vector_store %arg8[%c0_9, %c0_10, %c0_11], %4 {strides = array<i32>} : memref<18x18x128xf32, #tpu.memory_space<vmem>>, vector<18x1x128xf32>,
    %c0_12 = arith.constant 0 : index
    %c17_13 = arith.constant 17 : index
    %c0_14 = arith.constant 0 : index
    %8 = vector.load %arg8[%c0_12, %c17_13, %c0_14] : memref<18x18x128xf32, #tpu.memory_space<vmem>>, vector<18x1x128xf32>
    tpu.vector_store %arg8[%c0_12, %c17_13, %c0_14], %4 {strides = array<i32>} : memref<18x18x128xf32, #tpu.memory_space<vmem>>, vector<18x1x128xf32>,
    %c1 = arith.constant 1 : index
    %c1_15 = arith.constant 1 : index
    %c0_16 = arith.constant 0 : index
    %9 = vector.load %arg8[%c1, %c1_15, %c0_16] : memref<18x18x128xf32, #tpu.memory_space<vmem>>, vector<16x16x128xf32>
    tpu.vector_store %arg8[%c1, %c1_15, %c0_16], %2 {strides = array<i32>} : memref<18x18x128xf32, #tpu.memory_space<vmem>>, vector<16x16x128xf32>,
    %c0_17 = arith.constant 0 : index
    %c0_18 = arith.constant 0 : index
    %c0_19 = arith.constant 0 : index
    %10 = tpu.strided_load %arg8[%c0_17, %c0_18, %c0_19] {strides = array<i32: 2, 2, 1>} : memref<18x18x128xf32, #tpu.memory_space<vmem>>, vector<8x8x128xf32>
    %11 = vector.shape_cast %10 : vector<8x8x128xf32> to vector<64x128xf32>
    %c0_20 = arith.constant 0 : index
    %c1_21 = arith.constant 1 : index
    %c0_22 = arith.constant 0 : index
    %12 = tpu.strided_load %arg8[%c0_20, %c1_21, %c0_22] {strides = array<i32: 2, 2, 1>} : memref<18x18x128xf32, #tpu.memory_space<vmem>>, vector<8x8x128xf32>
    %13 = vector.shape_cast %12 : vector<8x8x128xf32> to vector<64x128xf32>
    %c0_23 = arith.constant 0 : index
    %c2 = arith.constant 2 : index
    %c0_24 = arith.constant 0 : index
    %14 = tpu.strided_load %arg8[%c0_23, %c2, %c0_24] {strides = array<i32: 2, 2, 1>} : memref<18x18x128xf32, #tpu.memory_space<vmem>>, vector<8x8x128xf32>
    %15 = vector.shape_cast %14 : vector<8x8x128xf32> to vector<64x128xf32>
    %c1_25 = arith.constant 1 : index
    %c0_26 = arith.constant 0 : index
    %c0_27 = arith.constant 0 : index
    %16 = tpu.strided_load %arg8[%c1_25, %c0_26, %c0_27] {strides = array<i32: 2, 2, 1>} : memref<18x18x128xf32, #tpu.memory_space<vmem>>, vector<8x8x128xf32>
    %17 = vector.shape_cast %16 : vector<8x8x128xf32> to vector<64x128xf32>
    %c1_28 = arith.constant 1 : index
    %c1_29 = arith.constant 1 : index
    %c0_30 = arith.constant 0 : index
    %18 = tpu.strided_load %arg8[%c1_28, %c1_29, %c0_30] {strides = array<i32: 2, 2, 1>} : memref<18x18x128xf32, #tpu.memory_space<vmem>>, vector<8x8x128xf32>
    %19 = vector.shape_cast %18 : vector<8x8x128xf32> to vector<64x128xf32>
    %c1_31 = arith.constant 1 : index
    %c2_32 = arith.constant 2 : index
    %c0_33 = arith.constant 0 : index
    %20 = tpu.strided_load %arg8[%c1_31, %c2_32, %c0_33] {strides = array<i32: 2, 2, 1>} : memref<18x18x128xf32, #tpu.memory_space<vmem>>, vector<8x8x128xf32>
    %21 = vector.shape_cast %20 : vector<8x8x128xf32> to vector<64x128xf32>
    %c2_34 = arith.constant 2 : index
    %c0_35 = arith.constant 0 : index
    %c0_36 = arith.constant 0 : index
    %22 = tpu.strided_load %arg8[%c2_34, %c0_35, %c0_36] {strides = array<i32: 2, 2, 1>} : memref<18x18x128xf32, #tpu.memory_space<vmem>>, vector<8x8x128xf32>
    %23 = vector.shape_cast %22 : vector<8x8x128xf32> to vector<64x128xf32>
    %c2_37 = arith.constant 2 : index
    %c1_38 = arith.constant 1 : index
    %c0_39 = arith.constant 0 : index
    %24 = tpu.strided_load %arg8[%c2_37, %c1_38, %c0_39] {strides = array<i32: 2, 2, 1>} : memref<18x18x128xf32, #tpu.memory_space<vmem>>, vector<8x8x128xf32>
    %25 = vector.shape_cast %24 : vector<8x8x128xf32> to vector<64x128xf32>
    %c2_40 = arith.constant 2 : index
    %c2_41 = arith.constant 2 : index
    %c0_42 = arith.constant 0 : index
    %26 = tpu.strided_load %arg8[%c2_40, %c2_41, %c0_42] {strides = array<i32: 2, 2, 1>} : memref<18x18x128xf32, #tpu.memory_space<vmem>>, vector<8x8x128xf32>
    %27 = vector.shape_cast %26 : vector<8x8x128xf32> to vector<64x128xf32>
    %28 = tpu.concatenate %11, %13, %15, %17, %19, %21, %23, %25, %27 in 1 : vector<64x128xf32>, vector<64x128xf32>, vector<64x128xf32>, vector<64x128xf32>, vector<64x128xf32>, vector<64x128xf32>, vector<64x128xf32>, vector<64x128xf32>, vector<64x128xf32> -> vector<64x1152xf32>
    %29 = arith.truncf %28 : vector<64x1152xf32> to vector<64x1152xbf16>
    %c0_43 = arith.constant 0 : index
    %c0_44 = arith.constant 0 : index
    %30 = vector.load %arg2[%c0_43, %c0_44] : memref<1152x128xbf16, #tpu.memory_space<vmem>>, vector<1152x128xbf16>
    %cst_45 = arith.constant dense<0.000000e+00> : vector<64x128xf32>
    %31 = tpu.matmul %29, %30, %cst_45 {dimension_numbers = #tpu.dot_dimension_numbers<[1], [0], [0], [1], [0, 0, 1, 1], [], []>} : vector<64x1152xbf16>, vector<1152x128xbf16>, vector<64x128xf32> -> vector<64x128xf32>
    %c0_46 = arith.constant 0 : index
    %c0_47 = arith.constant 0 : index
    %32 = vector.load %arg3[%c0_46, %c0_47] : memref<1x128xf32, #tpu.memory_space<vmem>>, vector<1x128xf32>
    %33 = vector.broadcast %32 : vector<1x128xf32> to vector<64x128xf32>
    %34 = arith.addf %31, %33 : vector<64x128xf32>
    %35 = vector.shape_cast %34 : vector<64x128xf32> to vector<1x8x8x128xf32>
    %c0_48 = arith.constant 0 : index
    %c0_49 = arith.constant 0 : index
    %c0_50 = arith.constant 0 : index
    %c0_51 = arith.constant 0 : index
    %36 = vector.load %arg6[%c0_48, %c0_49, %c0_50, %c0_51] : memref<1x8x8x128xf32, #tpu.memory_space<vmem>>, vector<1x8x8x128xf32>
    tpu.vector_store %arg6[%c0_48, %c0_49, %c0_50, %c0_51], %35 {strides = array<i32>} : memref<1x8x8x128xf32, #tpu.memory_space<vmem>>, vector<1x8x8x128xf32>,
    %cst_52 = arith.constant 0.000000e+00 : f32
    %37 = vector.broadcast %cst_52 : f32 to vector<64x128xf32>
    %38 = arith.maximumf %34, %37 : vector<64x128xf32>
    %39 = vector.shape_cast %38 : vector<64x128xf32> to vector<8x8x128xf32>
    %cst_53 = arith.constant 0.000000e+00 : f32
    %40 = vector.broadcast %cst_53 : f32 to vector<1x10x128xf32>
    %cst_54 = arith.constant 0.000000e+00 : f32
    %41 = vector.broadcast %cst_54 : f32 to vector<10x1x128xf32>
    %c0_55 = arith.constant 0 : index
    %c0_56 = arith.constant 0 : index
    %c0_57 = arith.constant 0 : index
    %42 = vector.load %arg9[%c0_55, %c0_56, %c0_57] : memref<10x10x128xf32, #tpu.memory_space<vmem>>, vector<1x10x128xf32>
    tpu.vector_store %arg9[%c0_55, %c0_56, %c0_57], %40 {strides = array<i32>} : memref<10x10x128xf32, #tpu.memory_space<vmem>>, vector<1x10x128xf32>,
    %c9 = arith.constant 9 : index
    %c0_58 = arith.constant 0 : index
    %c0_59 = arith.constant 0 : index
    %43 = vector.load %arg9[%c9, %c0_58, %c0_59] : memref<10x10x128xf32, #tpu.memory_space<vmem>>, vector<1x10x128xf32>
    tpu.vector_store %arg9[%c9, %c0_58, %c0_59], %40 {strides = array<i32>} : memref<10x10x128xf32, #tpu.memory_space<vmem>>, vector<1x10x128xf32>,
    %c0_60 = arith.constant 0 : index
    %c0_61 = arith.constant 0 : index
    %c0_62 = arith.constant 0 : index
    %44 = vector.load %arg9[%c0_60, %c0_61, %c0_62] : memref<10x10x128xf32, #tpu.memory_space<vmem>>, vector<10x1x128xf32>
    tpu.vector_store %arg9[%c0_60, %c0_61, %c0_62], %41 {strides = array<i32>} : memref<10x10x128xf32, #tpu.memory_space<vmem>>, vector<10x1x128xf32>,
    %c0_63 = arith.constant 0 : index
    %c9_64 = arith.constant 9 : index
    %c0_65 = arith.constant 0 : index
    %45 = vector.load %arg9[%c0_63, %c9_64, %c0_65] : memref<10x10x128xf32, #tpu.memory_space<vmem>>, vector<10x1x128xf32>
    tpu.vector_store %arg9[%c0_63, %c9_64, %c0_65], %41 {strides = array<i32>} : memref<10x10x128xf32, #tpu.memory_space<vmem>>, vector<10x1x128xf32>,
    %c1_66 = arith.constant 1 : index
    %c1_67 = arith.constant 1 : index
    %c0_68 = arith.constant 0 : index
    %46 = vector.load %arg9[%c1_66, %c1_67, %c0_68] : memref<10x10x128xf32, #tpu.memory_space<vmem>>, vector<8x8x128xf32>
    tpu.vector_store %arg9[%c1_66, %c1_67, %c0_68], %39 {strides = array<i32>} : memref<10x10x128xf32, #tpu.memory_space<vmem>>, vector<8x8x128xf32>,
    %c0_69 = arith.constant 0 : index
    %c0_70 = arith.constant 0 : index
    %c0_71 = arith.constant 0 : index
    %47 = tpu.strided_load %arg9[%c0_69, %c0_70, %c0_71] {strides = array<i32: 2, 2, 1>} : memref<10x10x128xf32, #tpu.memory_space<vmem>>, vector<4x4x128xf32>
    %48 = vector.shape_cast %47 : vector<4x4x128xf32> to vector<16x128xf32>
    %c0_72 = arith.constant 0 : index
    %c1_73 = arith.constant 1 : index
    %c0_74 = arith.constant 0 : index
    %49 = tpu.strided_load %arg9[%c0_72, %c1_73, %c0_74] {strides = array<i32: 2, 2, 1>} : memref<10x10x128xf32, #tpu.memory_space<vmem>>, vector<4x4x128xf32>
    %50 = vector.shape_cast %49 : vector<4x4x128xf32> to vector<16x128xf32>
    %c0_75 = arith.constant 0 : index
    %c2_76 = arith.constant 2 : index
    %c0_77 = arith.constant 0 : index
    %51 = tpu.strided_load %arg9[%c0_75, %c2_76, %c0_77] {strides = array<i32: 2, 2, 1>} : memref<10x10x128xf32, #tpu.memory_space<vmem>>, vector<4x4x128xf32>
    %52 = vector.shape_cast %51 : vector<4x4x128xf32> to vector<16x128xf32>
    %c1_78 = arith.constant 1 : index
    %c0_79 = arith.constant 0 : index
    %c0_80 = arith.constant 0 : index
    %53 = tpu.strided_load %arg9[%c1_78, %c0_79, %c0_80] {strides = array<i32: 2, 2, 1>} : memref<10x10x128xf32, #tpu.memory_space<vmem>>, vector<4x4x128xf32>
    %54 = vector.shape_cast %53 : vector<4x4x128xf32> to vector<16x128xf32>
    %c1_81 = arith.constant 1 : index
    %c1_82 = arith.constant 1 : index
    %c0_83 = arith.constant 0 : index
    %55 = tpu.strided_load %arg9[%c1_81, %c1_82, %c0_83] {strides = array<i32: 2, 2, 1>} : memref<10x10x128xf32, #tpu.memory_space<vmem>>, vector<4x4x128xf32>
    %56 = vector.shape_cast %55 : vector<4x4x128xf32> to vector<16x128xf32>
    %c1_84 = arith.constant 1 : index
    %c2_85 = arith.constant 2 : index
    %c0_86 = arith.constant 0 : index
    %57 = tpu.strided_load %arg9[%c1_84, %c2_85, %c0_86] {strides = array<i32: 2, 2, 1>} : memref<10x10x128xf32, #tpu.memory_space<vmem>>, vector<4x4x128xf32>
    %58 = vector.shape_cast %57 : vector<4x4x128xf32> to vector<16x128xf32>
    %c2_87 = arith.constant 2 : index
    %c0_88 = arith.constant 0 : index
    %c0_89 = arith.constant 0 : index
    %59 = tpu.strided_load %arg9[%c2_87, %c0_88, %c0_89] {strides = array<i32: 2, 2, 1>} : memref<10x10x128xf32, #tpu.memory_space<vmem>>, vector<4x4x128xf32>
    %60 = vector.shape_cast %59 : vector<4x4x128xf32> to vector<16x128xf32>
    %c2_90 = arith.constant 2 : index
    %c1_91 = arith.constant 1 : index
    %c0_92 = arith.constant 0 : index
    %61 = tpu.strided_load %arg9[%c2_90, %c1_91, %c0_92] {strides = array<i32: 2, 2, 1>} : memref<10x10x128xf32, #tpu.memory_space<vmem>>, vector<4x4x128xf32>
    %62 = vector.shape_cast %61 : vector<4x4x128xf32> to vector<16x128xf32>
    %c2_93 = arith.constant 2 : index
    %c2_94 = arith.constant 2 : index
    %c0_95 = arith.constant 0 : index
    %63 = tpu.strided_load %arg9[%c2_93, %c2_94, %c0_95] {strides = array<i32: 2, 2, 1>} : memref<10x10x128xf32, #tpu.memory_space<vmem>>, vector<4x4x128xf32>
    %64 = vector.shape_cast %63 : vector<4x4x128xf32> to vector<16x128xf32>
    %65 = tpu.concatenate %48, %50, %52, %54, %56, %58, %60, %62, %64 in 1 : vector<16x128xf32>, vector<16x128xf32>, vector<16x128xf32>, vector<16x128xf32>, vector<16x128xf32>, vector<16x128xf32>, vector<16x128xf32>, vector<16x128xf32>, vector<16x128xf32> -> vector<16x1152xf32>
    %66 = arith.truncf %65 : vector<16x1152xf32> to vector<16x1152xbf16>
    %c0_96 = arith.constant 0 : index
    %c0_97 = arith.constant 0 : index
    %67 = vector.load %arg4[%c0_96, %c0_97] : memref<1152x128xbf16, #tpu.memory_space<vmem>>, vector<1152x128xbf16>
    %cst_98 = arith.constant dense<0.000000e+00> : vector<16x128xf32>
    %68 = tpu.matmul %66, %67, %cst_98 {dimension_numbers = #tpu.dot_dimension_numbers<[1], [0], [0], [1], [0, 0, 1, 1], [], []>} : vector<16x1152xbf16>, vector<1152x128xbf16>, vector<16x128xf32> -> vector<16x128xf32>
    %c0_99 = arith.constant 0 : index
    %c0_100 = arith.constant 0 : index
    %69 = vector.load %arg5[%c0_99, %c0_100] : memref<1x128xf32, #tpu.memory_space<vmem>>, vector<1x128xf32>
    %70 = vector.broadcast %69 : vector<1x128xf32> to vector<16x128xf32>
    %71 = arith.addf %68, %70 : vector<16x128xf32>
    %72 = vector.shape_cast %71 : vector<16x128xf32> to vector<1x4x4x128xf32>
    %c0_101 = arith.constant 0 : index
    %c0_102 = arith.constant 0 : index
    %c0_103 = arith.constant 0 : index
    %c0_104 = arith.constant 0 : index
    %73 = vector.load %arg7[%c0_101, %c0_102, %c0_103, %c0_104] : memref<1x4x4x128xf32, #tpu.memory_space<vmem>>, vector<1x4x4x128xf32>
    tpu.vector_store %arg7[%c0_101, %c0_102, %c0_103, %c0_104], %72 {strides = array<i32>} : memref<1x4x4x128xf32, #tpu.memory_space<vmem>>, vector<1x4x4x128xf32>,
    return
  }
  func.func @transform_0(%arg0: i32) -> (i32, i32, i32, i32) {
    %c0_i32 = arith.constant 0 : i32
    %c0_i32_0 = arith.constant 0 : i32
    %c0_i32_1 = arith.constant 0 : i32
    %c0_i32_2 = arith.constant 0 : i32
    return %arg0, %c0_i32, %c0_i32_0, %c0_i32_1 : i32, i32, i32, i32
  }
  func.func @transform_1(%arg0: i32) -> (i32, i32) {
    %c0_i32 = arith.constant 0 : i32
    %c0_i32_0 = arith.constant 0 : i32
    %c0_i32_1 = arith.constant 0 : i32
    return %c0_i32, %c0_i32_0 : i32, i32
  }
  func.func @transform_2(%arg0: i32) -> (i32, i32) {
    %c0_i32 = arith.constant 0 : i32
    %c0_i32_0 = arith.constant 0 : i32
    %c0_i32_1 = arith.constant 0 : i32
    return %c0_i32, %c0_i32_0 : i32, i32
  }
  func.func @transform_3(%arg0: i32) -> (i32, i32) {
    %c0_i32 = arith.constant 0 : i32
    %c0_i32_0 = arith.constant 0 : i32
    %c0_i32_1 = arith.constant 0 : i32
    return %c0_i32, %c0_i32_0 : i32, i32
  }
  func.func @transform_4(%arg0: i32) -> (i32, i32) {
    %c0_i32 = arith.constant 0 : i32
    %c0_i32_0 = arith.constant 0 : i32
    %c0_i32_1 = arith.constant 0 : i32
    return %c0_i32, %c0_i32_0 : i32, i32
  }
  func.func @transform_5(%arg0: i32) -> (i32, i32, i32, i32) {
    %c0_i32 = arith.constant 0 : i32
    %c0_i32_0 = arith.constant 0 : i32
    %c0_i32_1 = arith.constant 0 : i32
    %c0_i32_2 = arith.constant 0 : i32
    return %arg0, %c0_i32, %c0_i32_0, %c0_i32_1 : i32, i32, i32, i32
  }
  func.func @transform_6(%arg0: i32) -> (i32, i32, i32, i32) {
    %c0_i32 = arith.constant 0 : i32
    %c0_i32_0 = arith.constant 0 : i32
    %c0_i32_1 = arith.constant 0 : i32
    %c0_i32_2 = arith.constant 0 : i32
    return %arg0, %c0_i32, %c0_i32_0, %c0_i32_1 : i32, i32, i32, i32
  }
}

</mosaic_0001>

<llo_original>
// kernel: last_level_p6p7_pallas.1
$region0: #{last_level_p6p7_pallas.1}
  #allocation0 [shape = 'u32[]', space=smem, size = 0x4, offset = 0x4, fixed_abs, tag = 'smem constant byte address 0x4 - core index']
  #allocation1 [shape = 'u32[144,128]{1,0:T(1,128)}', space=vmem, size = 0x12000, scoped, tag = 'internal scratch']
  #allocation2 [shape = 'f32[18,18,128]{2,1,0:T(8,128)}', space=vmem, size = 0x36000, scoped, tag = 'scratch operand']
  #allocation3 [shape = 'f32[10,10,128]{2,1,0:T(8,128)}', space=vmem, size = 0x14000, scoped, tag = 'scratch operand']
  %s0 = inlined_call_operand.vmem [shape: bf16[2,16,16,128], index: 0, kind: input, shape index: {}]
  %s1 = inlined_call_operand.vmem [shape: bf16[1152,128], index: 1, kind: input, shape index: {}]
  %s2 = inlined_call_operand.vmem [shape: f32[1,128], index: 2, kind: input, shape index: {}]
  %s3 = inlined_call_operand.vmem [shape: bf16[1152,128], index: 3, kind: input, shape index: {}]
  %s4 = inlined_call_operand.vmem [shape: f32[1,128], index: 4, kind: input, shape index: {}]
  %s5 = inlined_call_operand.hbm [shape: f32[2,8,8,128], index: 5, kind: output, shape index: {0}]
  %s6 = inlined_call_operand.hbm [shape: f32[2,4,4,128], index: 6, kind: output, shape index: {1}]
  %7 = xla_tuple %s5, %s6
  %s8 = sld [smem:[#allocation0]]
  $region61: #{last_level_p6p7_pallas.1} parent=0
    _
  %s10 = ssub.s32 1, %s8
  %s11 = scalar_select 0, %s10, %s8
  $region1: #{last_level_p6p7_pallas.1} parent=0
    #allocation4 [shape = 'u8[65536]{0}', space=vmem, size = 0x10000, scoped, tag = 'output window, operand 0']
    #allocation5 [shape = 's32[2]{0}', space=sflag, size = 0x8, scoped, tag = 'scoped memory for last_level_p6p7_pallas.1']
    #allocation6 [shape = 'u8[16384]{0}', space=vmem, size = 0x4000, scoped, tag = 'output window, operand 1']
    #allocation7 [shape = 's32[2]{0}', space=sflag, size = 0x8, scoped, tag = 'scoped memory for last_level_p6p7_pallas.1']
    %12 = vsyncpa [#allocation5], 0
    %s13 = scalar_lea.sflag [#allocation5], 1
    %14 = vsyncpa %s13, 0
    %15 = vsyncpa [#allocation7], 0
    %s16 = scalar_lea.sflag [#allocation7], 1
    %17 = vsyncpa %s16, 0
    loop: start=0, step=1, limit=4
    $region2: #{last_level_p6p7_pallas.1} parent=1 // loop_pre_header
      _
    $region3: #{last_level_p6p7_pallas.1} parent=1 // loop_header
      %s19 = sphi 0, %s23
      %p20 = scmp.ge.s32.totalorder %s19, 4
      %s29 = sphi 0, %s31
      %s32 = sphi 0, %s29
      %s33 = sphi 0, %s32
      %s49 = sphi 0, %s33
      %s53 = sphi 0, %s53
      %s55 = sphi 0, %s53
      %s56 = sphi 0, %s55
      %s70 = sphi 0, %s56
      %s74 = sphi 0, %s74
      %s76 = sphi 0, %s74
      %s77 = sphi 0, %s76
      %s91 = sphi 0, %s77
      %s95 = sphi 0, %s95
      %s97 = sphi 0, %s95
      %s98 = sphi 0, %s97
      %s112 = sphi 0, %s98
      %s116 = sphi 0, %s116
      %s118 = sphi 0, %s116
      %s119 = sphi 0, %s118
      %s133 = sphi 0, %s119
      %s139 = sphi 0, %s141
      %s142 = sphi 0, %s139
      %s143 = sphi 0, %s142
      %s159 = sphi 0, %s143
      %s165 = sphi 0, %s167
      %s168 = sphi 0, %s165
      %s169 = sphi 0, %s168
      %s185 = sphi 0, %s169
    $region4: #{last_level_p6p7_pallas.1} parent=1 // loop_header_branch
      %22 = sbr.rel (%p20) target = $region8
    $region5: #{last_level_p6p7_pallas.1} parent=1 // loop_body
      %s24 = ssub.s32 %s19, 1
      %s25 = ssub.s32 %s19, 2
      %s26 = sadd.s32 %s19, 1
      %s27 = ssub.s32 %s19, %s26
      %p28 = scmp.eq.s32.totalorder %s27, 0
      %s30 = sadd.s32 %s29, 1
      %s31 = scalar_select %p28, %s29, %s30
      %p34 = pneg %p28
      %p35 = scmp.eq.s32.totalorder %s19, 1
      %p36 = por %p34, %p35
      %p37 = scmp.ne.s32.totalorder %s29, %s32
      %p38 = scmp.eq.s32.totalorder %s19, 0
      %p39 = por %p37, %p38
      %p40 = scmp.ne.s32.totalorder %s29, %s32
      %p41 = scmp.eq.s32.totalorder %s24, 1
      %p42 = por %p40, %p41
      %p43 = scmp.ne.s32.totalorder %s32, %s33
      %p44 = scmp.eq.s32.totalorder %s24, 0
      %p45 = por %p43, %p44
      %p46 = scmp.ne.s32.totalorder %s32, %s33
      %p47 = scmp.eq.s32.totalorder %s25, 1
      %p48 = por %p46, %p47
      %p50 = scmp.ne.s32.totalorder %s33, %s49
      %p51 = scmp.eq.s32.totalorder %s25, 0
      %p52 = por %p50, %p51
      %s54 = sadd.s32 %s53, 1
      %p57 = scmp.eq.s32.totalorder %s19, 1
      %p58 = scmp.ne.s32.totalorder %s53, %s55
      %p59 = scmp.eq.s32.totalorder %s19, 0
      %p60 = por %p58, %p59
      %p61 = scmp.ne.s32.totalorder %s53, %s55
      %p62 = scmp.eq.s32.totalorder %s24, 1
      %p63 = por %p61, %p62
      %p64 = scmp.ne.s32.totalorder %s55, %s56
      %p65 = scmp.eq.s32.totalorder %s24, 0
      %p66 = por %p64, %p65
      %p67 = scmp.ne.s32.totalorder %s55, %s56
      %p68 = scmp.eq.s32.totalorder %s25, 1
      %p69 = por %p67, %p68
      %p71 = scmp.ne.s32.totalorder %s56, %s70
      %p72 = scmp.eq.s32.totalorder %s25, 0
      %p73 = por %p71, %p72
      %s75 = sadd.s32 %s74, 1
      %p78 = scmp.eq.s32.totalorder %s19, 1
      %p79 = scmp.ne.s32.totalorder %s74, %s76
      %p80 = scmp.eq.s32.totalorder %s19, 0
      %p81 = por %p79, %p80
      %p82 = scmp.ne.s32.totalorder %s74, %s76
      %p83 = scmp.eq.s32.totalorder %s24, 1
      %p84 = por %p82, %p83
      %p85 = scmp.ne.s32.totalorder %s76, %s77
      %p86 = scmp.eq.s32.totalorder %s24, 0
      %p87 = por %p85, %p86
      %p88 = scmp.ne.s32.totalorder %s76, %s77
      %p89 = scmp.eq.s32.totalorder %s25, 1
      %p90 = por %p88, %p89
      %p92 = scmp.ne.s32.totalorder %s77, %s91
      %p93 = scmp.eq.s32.totalorder %s25, 0
      %p94 = por %p92, %p93
      %s96 = sadd.s32 %s95, 1
      %p99 = scmp.eq.s32.totalorder %s19, 1
      %p100 = scmp.ne.s32.totalorder %s95, %s97
      %p101 = scmp.eq.s32.totalorder %s19, 0
      %p102 = por %p100, %p101
      %p103 = scmp.ne.s32.totalorder %s95, %s97
      %p104 = scmp.eq.s32.totalorder %s24, 1
      %p105 = por %p103, %p104
      %p106 = scmp.ne.s32.totalorder %s97, %s98
      %p107 = scmp.eq.s32.totalorder %s24, 0
      %p108 = por %p106, %p107
      %p109 = scmp.ne.s32.totalorder %s97, %s98
      %p110 = scmp.eq.s32.totalorder %s25, 1
      %p111 = por %p109, %p110
      %p113 = scmp.ne.s32.totalorder %s98, %s112
      %p114 = scmp.eq.s32.totalorder %s25, 0
      %p115 = por %p113, %p114
      %s117 = sadd.s32 %s116, 1
      %p120 = scmp.eq.s32.totalorder %s19, 1
      %p121 = scmp.ne.s32.totalorder %s116, %s118
      %p122 = scmp.eq.s32.totalorder %s19, 0
      %p123 = por %p121, %p122
      %p124 = scmp.ne.s32.totalorder %s116, %s118
      %p125 = scmp.eq.s32.totalorder %s24, 1
      %p126 = por %p124, %p125
      %p127 = scmp.ne.s32.totalorder %s118, %s119
      %p128 = scmp.eq.s32.totalorder %s24, 0
      %p129 = por %p127, %p128
      %p130 = scmp.ne.s32.totalorder %s118, %s119
      %p131 = scmp.eq.s32.totalorder %s25, 1
      %p132 = por %p130, %p131
      %p134 = scmp.ne.s32.totalorder %s119, %s133
      %p135 = scmp.eq.s32.totalorder %s25, 0
      %p136 = por %p134, %p135
      %s137 = ssub.s32 %s19, %s26
      %p138 = scmp.eq.s32.totalorder %s137, 0
      %s140 = sadd.s32 %s139, 1
      %s141 = scalar_select %p138, %s139, %s140
      %p144 = pneg %p138
      %p145 = scmp.eq.s32.totalorder %s19, 1
      %p146 = por %p144, %p145
      %p147 = scmp.ne.s32.totalorder %s139, %s142
      %p148 = scmp.eq.s32.totalorder %s19, 0
      %p149 = por %p147, %p148
      %p150 = scmp.ne.s32.totalorder %s139, %s142
      %p151 = scmp.eq.s32.totalorder %s24, 1
      %p152 = por %p150, %p151
      %p153 = scmp.ne.s32.totalorder %s142, %s143
      %p154 = scmp.eq.s32.totalorder %s24, 0
      %p155 = por %p153, %p154
      %p156 = scmp.ne.s32.totalorder %s142, %s143
      %p157 = scmp.eq.s32.totalorder %s25, 1
      %p158 = por %p156, %p157
      %p160 = scmp.ne.s32.totalorder %s143, %s159
      %p161 = scmp.eq.s32.totalorder %s25, 0
      %p162 = por %p160, %p161
      %s163 = ssub.s32 %s19, %s26
      %p164 = scmp.eq.s32.totalorder %s163, 0
      %s166 = sadd.s32 %s165, 1
      %s167 = scalar_select %p164, %s165, %s166
      %p170 = pneg %p164
      %p171 = scmp.eq.s32.totalorder %s19, 1
      %p172 = por %p170, %p171
      %p173 = scmp.ne.s32.totalorder %s165, %s168
      %p174 = scmp.eq.s32.totalorder %s19, 0
      %p175 = por %p173, %p174
      %p176 = scmp.ne.s32.totalorder %s165, %s168
      %p177 = scmp.eq.s32.totalorder %s24, 1
      %p178 = por %p176, %p177
      %p179 = scmp.ne.s32.totalorder %s168, %s169
      %p180 = scmp.eq.s32.totalorder %s24, 0
      %p181 = por %p179, %p180
      %p182 = scmp.ne.s32.totalorder %s168, %s169
      %p183 = scmp.eq.s32.totalorder %s25, 1
      %p184 = por %p182, %p183
      %p186 = scmp.ne.s32.totalorder %s169, %s185
      %p187 = scmp.eq.s32.totalorder %s25, 0
      %p188 = por %p186, %p187
      %p189 = scmp.le.s32.totalorder 1, %s19
      %p190 = scmp.lt.s32.totalorder %s19, 3
      %p191 = pnand %p189, %p190
      %p192 = pneg %p191
      // Predicated region
      $region9: #{last_level_p6p7_pallas.1} parent=5 // pred_check
        _
      $region10: #{last_level_p6p7_pallas.1} parent=5 // pred_check_branch
        %194 = sbr.rel (%p191) target = $region12
      $region11: #{last_level_p6p7_pallas.1} parent=5 // pred_region
        %s195 = ssub.s32 %s19, 1
        // Predicated region
        $region13: #{last_level_p6p7_pallas.1} parent=11 // pred_check
          %p196 = pneg %p66
        $region14: #{last_level_p6p7_pallas.1} parent=11 // pred_check_branch
          %198 = sbr.rel (%p196) target = $region16
        $region15: #{last_level_p6p7_pallas.1} parent=11 // pred_region
          _
        $region16: #{last_level_p6p7_pallas.1} parent=11 // pred_fallthru
          _
        // Predicated region
        $region17: #{last_level_p6p7_pallas.1} parent=11 // pred_check
          %p199 = pneg %p87
        $region18: #{last_level_p6p7_pallas.1} parent=11 // pred_check_branch
          %201 = sbr.rel (%p199) target = $region20
        $region19: #{last_level_p6p7_pallas.1} parent=11 // pred_region
          _
        $region20: #{last_level_p6p7_pallas.1} parent=11 // pred_fallthru
          _
        // Predicated region
        $region21: #{last_level_p6p7_pallas.1} parent=11 // pred_check
          %p202 = pneg %p108
        $region22: #{last_level_p6p7_pallas.1} parent=11 // pred_check_branch
          %204 = sbr.rel (%p202) target = $region24
        $region23: #{last_level_p6p7_pallas.1} parent=11 // pred_region
          _
        $region24: #{last_level_p6p7_pallas.1} parent=11 // pred_fallthru
          _
        // Predicated region
        $region25: #{last_level_p6p7_pallas.1} parent=11 // pred_check
          %p205 = pneg %p129
        $region26: #{last_level_p6p7_pallas.1} parent=11 // pred_check_branch
          %207 = sbr.rel (%p205) target = $region28
        $region27: #{last_level_p6p7_pallas.1} parent=11 // pred_region
          _
        $region28: #{last_level_p6p7_pallas.1} parent=11 // pred_fallthru
          _
      $region12: #{last_level_p6p7_pallas.1} parent=5 // pred_fallthru
        _
      %p208 = scmp.lt.s32.totalorder %s19, 2
      // Predicated region
      $region29: #{last_level_p6p7_pallas.1} parent=5 // pred_check
        %p209 = pneg %p208
      $region30: #{last_level_p6p7_pallas.1} parent=5 // pred_check_branch
        %211 = sbr.rel (%p209) target = $region32
      $region31: #{last_level_p6p7_pallas.1} parent=5 // pred_region
        // Predicated region
        $region33: #{last_level_p6p7_pallas.1} parent=31 // pred_check
          %p212 = pneg %p39
        $region34: #{last_level_p6p7_pallas.1} parent=31 // pred_check_branch
          %214 = sbr.rel (%p212) target = $region36
        $region35: #{last_level_p6p7_pallas.1} parent=31 // pred_region
          %p215 = scmp.lt.s32.totalorder %s19, 1
          %s216 = scalar_select %p215, %s19, 1
          %s217 = smul.addr %s216, 32
          %s218 = smul.addr %s217, 4
          %s219 = scalar_lea.vmem %s0, %s218
        $region36: #{last_level_p6p7_pallas.1} parent=31 // pred_fallthru
          _
      $region32: #{last_level_p6p7_pallas.1} parent=5 // pred_fallthru
        _
      %p220 = scmp.le.s32.totalorder 1, %s19
      %p221 = scmp.lt.s32.totalorder %s19, 3
      %p222 = pnand %p220, %p221
      %p223 = pneg %p222
      // Predicated region
      $region37: #{last_level_p6p7_pallas.1} parent=5 // pred_check
        _
      $region38: #{last_level_p6p7_pallas.1} parent=5 // pred_check_branch
        %225 = sbr.rel (%p222) target = $region40
      $region39: #{last_level_p6p7_pallas.1} parent=5 // pred_region
        %s226 = ssub.s32 %s19, 1
        %p227 = scmp.lt.s32.totalorder %s24, 1
        %s228 = scalar_select %p227, %s24, 1
        %s229 = smul.addr %s228, 32
        %s230 = smul.addr %s229, 4
        %s231 = scalar_lea.vmem %s0, %s230
        %p232 = pneg %p45
        %p233 = pneg %p42
        %p234 = pneg %p66
        %p235 = pneg %p63
        %p236 = pneg %p87
        %p237 = pneg %p84
        %p238 = pneg %p108
        %p239 = pneg %p105
        %p240 = pneg %p129
        %p241 = pneg %p126
        %p242 = pneg %p155
        %p243 = pneg %p152
        %s244 = sand.u32 %s142, 1
        %s245 = scalar_lea.sflag [#allocation5], %s244
        %s246 = sand.u32 %s142, 1
        %s247 = smul.addr %s246, 64
        %s248 = scalar_lea.vmem [#allocation4], %s247
        %p249 = pneg %p181
        %p250 = pneg %p178
        %s251 = sand.u32 %s168, 1
        %s252 = scalar_lea.sflag [#allocation7], %s251
        %s253 = sand.u32 %s168, 1
        %s254 = smul.addr %s253, 16
        %s255 = scalar_lea.vmem [#allocation6], %s254
        %p256 = scmp.lt.s32.totalorder %s24, 1
        %s257 = scalar_select %p256, %s24, 1
        %s258 = smul.addr %s257, 32
        %s259 = smul.addr %s258, 4
        %s260 = scalar_lea.vmem %s0, %s259
        %v262 = vld [vmem:[%s260] sm:$0xf]
        %v263 = vld [vmem:[%s260 + $0x4] sm:$0xf]
        %v264 = vld [vmem:[%s260 + $0x8] sm:$0xf]
        %v265 = vld [vmem:[%s260 + $0xc] sm:$0xf]
        %v266 = vld [vmem:[%s260 + $0x10] sm:$0xf]
        %v267 = vld [vmem:[%s260 + $0x14] sm:$0xf]
        %v268 = vld [vmem:[%s260 + $0x18] sm:$0xf]
        %v269 = vld [vmem:[%s260 + $0x1c] sm:$0xf]
        %v270 = vld [vmem:[%s260 + $0x20] sm:$0xf]
        %v271 = vld [vmem:[%s260 + $0x24] sm:$0xf]
        %v272 = vld [vmem:[%s260 + $0x28] sm:$0xf]
        %v273 = vld [vmem:[%s260 + $0x2c] sm:$0xf]
        %v274 = vld [vmem:[%s260 + $0x30] sm:$0xf]
        %v275 = vld [vmem:[%s260 + $0x34] sm:$0xf]
        %v276 = vld [vmem:[%s260 + $0x38] sm:$0xf]
        %v277 = vld [vmem:[%s260 + $0x3c] sm:$0xf]
        %v278 = vld [vmem:[%s260 + $0x40] sm:$0xf]
        %v279 = vld [vmem:[%s260 + $0x44] sm:$0xf]
        %v280 = vld [vmem:[%s260 + $0x48] sm:$0xf]
        %v281 = vld [vmem:[%s260 + $0x4c] sm:$0xf]
        %v282 = vld [vmem:[%s260 + $0x50] sm:$0xf]
        %v283 = vld [vmem:[%s260 + $0x54] sm:$0xf]
        %v284 = vld [vmem:[%s260 + $0x58] sm:$0xf]
        %v285 = vld [vmem:[%s260 + $0x5c] sm:$0xf]
        %v286 = vld [vmem:[%s260 + $0x60] sm:$0xf]
        %v287 = vld [vmem:[%s260 + $0x64] sm:$0xf]
        %v288 = vld [vmem:[%s260 + $0x68] sm:$0xf]
        %v289 = vld [vmem:[%s260 + $0x6c] sm:$0xf]
        %v290 = vld [vmem:[%s260 + $0x70] sm:$0xf]
        %v291 = vld [vmem:[%s260 + $0x74] sm:$0xf]
        %v292 = vld [vmem:[%s260 + $0x78] sm:$0xf]
        %v293 = vld [vmem:[%s260 + $0x7c] sm:$0xf]
        %v294 = vunpack.c.l.bf16 %v262
        %v295 = vunpack.c.l.bf16 %v263
        %v296 = vunpack.c.l.bf16 %v264
        %v297 = vunpack.c.l.bf16 %v265
        %v298 = vunpack.c.l.bf16 %v266
        %v299 = vunpack.c.l.bf16 %v267
        %v300 = vunpack.c.l.bf16 %v268
        %v301 = vunpack.c.l.bf16 %v269
        %v302 = vunpack.c.l.bf16 %v270
        %v303 = vunpack.c.l.bf16 %v271
        %v304 = vunpack.c.l.bf16 %v272
        %v305 = vunpack.c.l.bf16 %v273
        %v306 = vunpack.c.l.bf16 %v274
        %v307 = vunpack.c.l.bf16 %v275
        %v308 = vunpack.c.l.bf16 %v276
        %v309 = vunpack.c.l.bf16 %v277
        %v310 = vunpack.c.l.bf16 %v278
        %v311 = vunpack.c.l.bf16 %v279
        %v312 = vunpack.c.l.bf16 %v280
        %v313 = vunpack.c.l.bf16 %v281
        %v314 = vunpack.c.l.bf16 %v282
        %v315 = vunpack.c.l.bf16 %v283
        %v316 = vunpack.c.l.bf16 %v284
        %v317 = vunpack.c.l.bf16 %v285
        %v318 = vunpack.c.l.bf16 %v286
        %v319 = vunpack.c.l.bf16 %v287
        %v320 = vunpack.c.l.bf16 %v288
        %v321 = vunpack.c.l.bf16 %v289
        %v322 = vunpack.c.l.bf16 %v290
        %v323 = vunpack.c.l.bf16 %v291
        %v324 = vunpack.c.l.bf16 %v292
        %v325 = vunpack.c.l.bf16 %v293
        %326 = vst [vmem:[#allocation2] sm:$0xff] 0.0
        %327 = vst [vmem:[#allocation2 + $0x8] sm:$0xff] 0.0
        %328 = vst [vmem:[#allocation2 + $0x10] sm:$0x3] 0.0
        %s329 = scalar_lea.vmem [#allocation2], 408
        %330 = vst [vmem:[%s329] sm:$0xff] 0.0
        %331 = vst [vmem:[%s329 + $0x8] sm:$0xff] 0.0
        %332 = vst [vmem:[%s329 + $0x10] sm:$0x3] 0.0
        %333 = vst [vmem:[#allocation2] sm:$0x1] 0.0
        %334 = vst [vmem:[#allocation2 + $0x18] sm:$0x1] 0.0
        %335 = vst [vmem:[#allocation2 + $0x30] sm:$0x1] 0.0
        %336 = vst [vmem:[#allocation2 + $0x48] sm:$0x1] 0.0
        %337 = vst [vmem:[#allocation2 + $0x60] sm:$0x1] 0.0
        %338 = vst [vmem:[#allocation2 + $0x78] sm:$0x1] 0.0
        %339 = vst [vmem:[#allocation2 + $0x90] sm:$0x1] 0.0
        %340 = vst [vmem:[#allocation2 + $0xa8] sm:$0x1] 0.0
        %341 = vst [vmem:[#allocation2 + $0xc0] sm:$0x1] 0.0
        %342 = vst [vmem:[#allocation2 + $0xd8] sm:$0x1] 0.0
        %343 = vst [vmem:[#allocation2 + $0xf0] sm:$0x1] 0.0
        %344 = vst [vmem:[#allocation2 + $0x108] sm:$0x1] 0.0
        %345 = vst [vmem:[#allocation2 + $0x120] sm:$0x1] 0.0
        %346 = vst [vmem:[#allocation2 + $0x138] sm:$0x1] 0.0
        %347 = vst [vmem:[#allocation2 + $0x150] sm:$0x1] 0.0
        %348 = vst [vmem:[#allocation2 + $0x168] sm:$0x1] 0.0
        %349 = vst [vmem:[#allocation2 + $0x180] sm:$0x1] 0.0
        %350 = vst [vmem:[#allocation2 + $0x198] sm:$0x1] 0.0
        %351 = vst [vmem:[#allocation2 + $0x11] sm:$0x1] 0.0
        %352 = vst [vmem:[#allocation2 + $0x29] sm:$0x1] 0.0
        %353 = vst [vmem:[#allocation2 + $0x41] sm:$0x1] 0.0
        %354 = vst [vmem:[#allocation2 + $0x59] sm:$0x1] 0.0
        %355 = vst [vmem:[#allocation2 + $0x71] sm:$0x1] 0.0
        %356 = vst [vmem:[#allocation2 + $0x89] sm:$0x1] 0.0
        %357 = vst [vmem:[#allocation2 + $0xa1] sm:$0x1] 0.0
        %358 = vst [vmem:[#allocation2 + $0xb9] sm:$0x1] 0.0
        %359 = vst [vmem:[#allocation2 + $0xd1] sm:$0x1] 0.0
        %360 = vst [vmem:[#allocation2 + $0xe9] sm:$0x1] 0.0
        %361 = vst [vmem:[#allocation2 + $0x101] sm:$0x1] 0.0
        %362 = vst [vmem:[#allocation2 + $0x119] sm:$0x1] 0.0
        %363 = vst [vmem:[#allocation2 + $0x131] sm:$0x1] 0.0
        %364 = vst [vmem:[#allocation2 + $0x149] sm:$0x1] 0.0
        %365 = vst [vmem:[#allocation2 + $0x161] sm:$0x1] 0.0
        %366 = vst [vmem:[#allocation2 + $0x179] sm:$0x1] 0.0
        %367 = vst [vmem:[#allocation2 + $0x191] sm:$0x1] 0.0
        %368 = vst [vmem:[#allocation2 + $0x1a9] sm:$0x1] 0.0
        %s369 = scalar_lea.vmem [#allocation2], 24
        %370 = vst [vmem:[%s369 + $0x1] sm:$0xff] %v294
        %371 = vst [vmem:[%s369 + $0x9] sm:$0xff] %v295
        %372 = vst [vmem:[%s369 + $0x19] sm:$0xff] %v296
        %373 = vst [vmem:[%s369 + $0x21] sm:$0xff] %v297
        %374 = vst [vmem:[%s369 + $0x31] sm:$0xff] %v298
        %375 = vst [vmem:[%s369 + $0x39] sm:$0xff] %v299
        %376 = vst [vmem:[%s369 + $0x49] sm:$0xff] %v300
        %377 = vst [vmem:[%s369 + $0x51] sm:$0xff] %v301
        %378 = vst [vmem:[%s369 + $0x61] sm:$0xff] %v302
        %379 = vst [vmem:[%s369 + $0x69] sm:$0xff] %v303
        %380 = vst [vmem:[%s369 + $0x79] sm:$0xff] %v304
        %381 = vst [vmem:[%s369 + $0x81] sm:$0xff] %v305
        %382 = vst [vmem:[%s369 + $0x91] sm:$0xff] %v306
        %383 = vst [vmem:[%s369 + $0x99] sm:$0xff] %v307
        %384 = vst [vmem:[%s369 + $0xa9] sm:$0xff] %v308
        %385 = vst [vmem:[%s369 + $0xb1] sm:$0xff] %v309
        %386 = vst [vmem:[%s369 + $0xc1] sm:$0xff] %v310
        %387 = vst [vmem:[%s369 + $0xc9] sm:$0xff] %v311
        %388 = vst [vmem:[%s369 + $0xd9] sm:$0xff] %v312
        %389 = vst [vmem:[%s369 + $0xe1] sm:$0xff] %v313
        %390 = vst [vmem:[%s369 + $0xf1] sm:$0xff] %v314
        %391 = vst [vmem:[%s369 + $0xf9] sm:$0xff] %v315
        %392 = vst [vmem:[%s369 + $0x109] sm:$0xff] %v316
        %393 = vst [vmem:[%s369 + $0x111] sm:$0xff] %v317
        %394 = vst [vmem:[%s369 + $0x121] sm:$0xff] %v318
        %395 = vst [vmem:[%s369 + $0x129] sm:$0xff] %v319
        %396 = vst [vmem:[%s369 + $0x139] sm:$0xff] %v320
        %397 = vst [vmem:[%s369 + $0x141] sm:$0xff] %v321
        %398 = vst [vmem:[%s369 + $0x151] sm:$0xff] %v322
        %399 = vst [vmem:[%s369 + $0x159] sm:$0xff] %v323
        %400 = vst [vmem:[%s369 + $0x169] sm:$0xff] %v324
        %401 = vst [vmem:[%s369 + $0x171] sm:$0xff] %v325
        %v402 = vld [vmem:[#allocation2] ss:$2 sm:$0xff]
        %s403 = scalar_lea.vmem [#allocation2], 48
        %v404 = vld [vmem:[%s403] ss:$2 sm:$0xff]
        %s405 = scalar_lea.vmem [#allocation2], 96
        %v406 = vld [vmem:[%s405] ss:$2 sm:$0xff]
        %s407 = scalar_lea.vmem [#allocation2], 144
        %v408 = vld [vmem:[%s407] ss:$2 sm:$0xff]
        %s409 = scalar_lea.vmem [#allocation2], 192
        %v410 = vld [vmem:[%s409] ss:$2 sm:$0xff]
        %s411 = scalar_lea.vmem [#allocation2], 240
        %v412 = vld [vmem:[%s411] ss:$2 sm:$0xff]
        %s413 = scalar_lea.vmem [#allocation2], 288
        %v414 = vld [vmem:[%s413] ss:$2 sm:$0xff]
        %s415 = scalar_lea.vmem [#allocation2], 336
        %v416 = vld [vmem:[%s415] ss:$2 sm:$0xff]
        %s417 = scalar_lea.vmem [#allocation2], 1
        %v418 = vld [vmem:[%s417] ss:$2 sm:$0xff]
        %s419 = scalar_lea.vmem [#allocation2], 49
        %v420 = vld [vmem:[%s419] ss:$2 sm:$0xff]
        %s421 = scalar_lea.vmem [#allocation2], 97
        %v422 = vld [vmem:[%s421] ss:$2 sm:$0xff]
        %s423 = scalar_lea.vmem [#allocation2], 145
        %v424 = vld [vmem:[%s423] ss:$2 sm:$0xff]
        %s425 = scalar_lea.vmem [#allocation2], 193
        %v426 = vld [vmem:[%s425] ss:$2 sm:$0xff]
        %s427 = scalar_lea.vmem [#allocation2], 241
        %v428 = vld [vmem:[%s427] ss:$2 sm:$0xff]
        %s429 = scalar_lea.vmem [#allocation2], 289
        %v430 = vld [vmem:[%s429] ss:$2 sm:$0xff]
        %s431 = scalar_lea.vmem [#allocation2], 337
        %v432 = vld [vmem:[%s431] ss:$2 sm:$0xff]
        %s433 = scalar_lea.vmem [#allocation2], 2
        %v434 = vld [vmem:[%s433] ss:$2 sm:$0xff]
        %s435 = scalar_lea.vmem [#allocation2], 50
        %v436 = vld [vmem:[%s435] ss:$2 sm:$0xff]
        %s437 = scalar_lea.vmem [#allocation2], 98
        %v438 = vld [vmem:[%s437] ss:$2 sm:$0xff]
        %s439 = scalar_lea.vmem [#allocation2], 146
        %v440 = vld [vmem:[%s439] ss:$2 sm:$0xff]
        %s441 = scalar_lea.vmem [#allocation2], 194
        %v442 = vld [vmem:[%s441] ss:$2 sm:$0xff]
        %s443 = scalar_lea.vmem [#allocation2], 242
        %v444 = vld [vmem:[%s443] ss:$2 sm:$0xff]
        %s445 = scalar_lea.vmem [#allocation2], 290
        %v446 = vld [vmem:[%s445] ss:$2 sm:$0xff]
        %s447 = scalar_lea.vmem [#allocation2], 338
        %v448 = vld [vmem:[%s447] ss:$2 sm:$0xff]
        %v449 = vld [vmem:[%s369] ss:$2 sm:$0xff]
        %s450 = scalar_lea.vmem %s369, 48 [#allocation2]
        %v451 = vld [vmem:[%s450] ss:$2 sm:$0xff]
        %s452 = scalar_lea.vmem %s369, 96 [#allocation2]
        %v453 = vld [vmem:[%s452] ss:$2 sm:$0xff]
        %s454 = scalar_lea.vmem %s369, 144 [#allocation2]
        %v455 = vld [vmem:[%s454] ss:$2 sm:$0xff]
        %s456 = scalar_lea.vmem %s369, 192 [#allocation2]
        %v457 = vld [vmem:[%s456] ss:$2 sm:$0xff]
        %s458 = scalar_lea.vmem %s369, 240 [#allocation2]
        %v459 = vld [vmem:[%s458] ss:$2 sm:$0xff]
        %s460 = scalar_lea.vmem %s369, 288 [#allocation2]
        %v461 = vld [vmem:[%s460] ss:$2 sm:$0xff]
        %s462 = scalar_lea.vmem %s369, 336 [#allocation2]
        %v463 = vld [vmem:[%s462] ss:$2 sm:$0xff]
        %s464 = scalar_lea.vmem %s369, 1 [#allocation2]
        %v465 = vld [vmem:[%s464] ss:$2 sm:$0xff]
        %s466 = scalar_lea.vmem %s369, 49 [#allocation2]
        %v467 = vld [vmem:[%s466] ss:$2 sm:$0xff]
        %s468 = scalar_lea.vmem %s369, 97 [#allocation2]
        %v469 = vld [vmem:[%s468] ss:$2 sm:$0xff]
        %s470 = scalar_lea.vmem %s369, 145 [#allocation2]
        %v471 = vld [vmem:[%s470] ss:$2 sm:$0xff]
        %s472 = scalar_lea.vmem %s369, 193 [#allocation2]
        %v473 = vld [vmem:[%s472] ss:$2 sm:$0xff]
        %s474 = scalar_lea.vmem %s369, 241 [#allocation2]
        %v475 = vld [vmem:[%s474] ss:$2 sm:$0xff]
        %s476 = scalar_lea.vmem %s369, 289 [#allocation2]
        %v477 = vld [vmem:[%s476] ss:$2 sm:$0xff]
        %s478 = scalar_lea.vmem %s369, 337 [#allocation2]
        %v479 = vld [vmem:[%s478] ss:$2 sm:$0xff]
        %s480 = scalar_lea.vmem %s369, 2 [#allocation2]
        %v481 = vld [vmem:[%s480] ss:$2 sm:$0xff]
        %s482 = scalar_lea.vmem %s369, 50 [#allocation2]
        %v483 = vld [vmem:[%s482] ss:$2 sm:$0xff]
        %s484 = scalar_lea.vmem %s369, 98 [#allocation2]
        %v485 = vld [vmem:[%s484] ss:$2 sm:$0xff]
        %s486 = scalar_lea.vmem %s369, 146 [#allocation2]
        %v487 = vld [vmem:[%s486] ss:$2 sm:$0xff]
        %s488 = scalar_lea.vmem %s369, 194 [#allocation2]
        %v489 = vld [vmem:[%s488] ss:$2 sm:$0xff]
        %s490 = scalar_lea.vmem %s369, 242 [#allocation2]
        %v491 = vld [vmem:[%s490] ss:$2 sm:$0xff]
        %s492 = scalar_lea.vmem %s369, 290 [#allocation2]
        %v493 = vld [vmem:[%s492] ss:$2 sm:$0xff]
        %s494 = scalar_lea.vmem %s369, 338 [#allocation2]
        %v495 = vld [vmem:[%s494] ss:$2 sm:$0xff]
        %s496 = scalar_lea.vmem [#allocation2], 48
        %v497 = vld [vmem:[%s496] ss:$2 sm:$0xff]
        %s498 = scalar_lea.vmem %s496, 48 [#allocation2]
        %v499 = vld [vmem:[%s498] ss:$2 sm:$0xff]
        %s500 = scalar_lea.vmem %s496, 96 [#allocation2]
        %v501 = vld [vmem:[%s500] ss:$2 sm:$0xff]
        %s502 = scalar_lea.vmem %s496, 144 [#allocation2]
        %v503 = vld [vmem:[%s502] ss:$2 sm:$0xff]
        %s504 = scalar_lea.vmem %s496, 192 [#allocation2]
        %v505 = vld [vmem:[%s504] ss:$2 sm:$0xff]
        %s506 = scalar_lea.vmem %s496, 240 [#allocation2]
        %v507 = vld [vmem:[%s506] ss:$2 sm:$0xff]
        %s508 = scalar_lea.vmem %s496, 288 [#allocation2]
        %v509 = vld [vmem:[%s508] ss:$2 sm:$0xff]
        %s510 = scalar_lea.vmem %s496, 336 [#allocation2]
        %v511 = vld [vmem:[%s510] ss:$2 sm:$0xff]
        %s512 = scalar_lea.vmem %s496, 1 [#allocation2]
        %v513 = vld [vmem:[%s512] ss:$2 sm:$0xff]
        %s514 = scalar_lea.vmem %s496, 49 [#allocation2]
        %v515 = vld [vmem:[%s514] ss:$2 sm:$0xff]
        %s516 = scalar_lea.vmem %s496, 97 [#allocation2]
        %v517 = vld [vmem:[%s516] ss:$2 sm:$0xff]
        %s518 = scalar_lea.vmem %s496, 145 [#allocation2]
        %v519 = vld [vmem:[%s518] ss:$2 sm:$0xff]
        %s520 = scalar_lea.vmem %s496, 193 [#allocation2]
        %v521 = vld [vmem:[%s520] ss:$2 sm:$0xff]
        %s522 = scalar_lea.vmem %s496, 241 [#allocation2]
        %v523 = vld [vmem:[%s522] ss:$2 sm:$0xff]
        %s524 = scalar_lea.vmem %s496, 289 [#allocation2]
        %v525 = vld [vmem:[%s524] ss:$2 sm:$0xff]
        %s526 = scalar_lea.vmem %s496, 337 [#allocation2]
        %v527 = vld [vmem:[%s526] ss:$2 sm:$0xff]
        %s528 = scalar_lea.vmem %s496, 2 [#allocation2]
        %v529 = vld [vmem:[%s528] ss:$2 sm:$0xff]
        %s530 = scalar_lea.vmem %s496, 50 [#allocation2]
        %v531 = vld [vmem:[%s530] ss:$2 sm:$0xff]
        %s532 = scalar_lea.vmem %s496, 98 [#allocation2]
        %v533 = vld [vmem:[%s532] ss:$2 sm:$0xff]
        %s534 = scalar_lea.vmem %s496, 146 [#allocation2]
        %v535 = vld [vmem:[%s534] ss:$2 sm:$0xff]
        %s536 = scalar_lea.vmem %s496, 194 [#allocation2]
        %v537 = vld [vmem:[%s536] ss:$2 sm:$0xff]
        %s538 = scalar_lea.vmem %s496, 242 [#allocation2]
        %v539 = vld [vmem:[%s538] ss:$2 sm:$0xff]
        %s540 = scalar_lea.vmem %s496, 290 [#allocation2]
        %v541 = vld [vmem:[%s540] ss:$2 sm:$0xff]
        %s542 = scalar_lea.vmem %s496, 338 [#allocation2]
        %v543 = vld [vmem:[%s542] ss:$2 sm:$0xff]
        %v544 = vpack.c.bf16 %v404, %v402
        %v545 = vpack.c.bf16 %v420, %v418
        %v546 = vpack.c.bf16 %v436, %v434
        %v547 = vpack.c.bf16 %v451, %v449
        %v548 = vpack.c.bf16 %v467, %v465
        %v549 = vpack.c.bf16 %v483, %v481
        %v550 = vpack.c.bf16 %v499, %v497
        %v551 = vpack.c.bf16 %v515, %v513
        %v552 = vpack.c.bf16 %v531, %v529
        %v553 = vpack.c.bf16 %v408, %v406
        %v554 = vpack.c.bf16 %v424, %v422
        %v555 = vpack.c.bf16 %v440, %v438
        %v556 = vpack.c.bf16 %v455, %v453
        %v557 = vpack.c.bf16 %v471, %v469
        %v558 = vpack.c.bf16 %v487, %v485
        %v559 = vpack.c.bf16 %v503, %v501
        %v560 = vpack.c.bf16 %v519, %v517
        %v561 = vpack.c.bf16 %v535, %v533
        %v562 = vpack.c.bf16 %v412, %v410
        %v563 = vpack.c.bf16 %v428, %v426
        %v564 = vpack.c.bf16 %v444, %v442
        %v565 = vpack.c.bf16 %v459, %v457
        %v566 = vpack.c.bf16 %v475, %v473
        %v567 = vpack.c.bf16 %v491, %v489
        %v568 = vpack.c.bf16 %v507, %v505
        %v569 = vpack.c.bf16 %v523, %v521
        %v570 = vpack.c.bf16 %v539, %v537
        %v571 = vpack.c.bf16 %v416, %v414
        %v572 = vpack.c.bf16 %v432, %v430
        %v573 = vpack.c.bf16 %v448, %v446
        %v574 = vpack.c.bf16 %v463, %v461
        %v575 = vpack.c.bf16 %v479, %v477
        %v576 = vpack.c.bf16 %v495, %v493
        %v577 = vpack.c.bf16 %v511, %v509
        %v578 = vpack.c.bf16 %v527, %v525
        %v579 = vpack.c.bf16 %v543, %v541
        %v580 = vld [vmem:[%s1] sm:$0xf]
        %v581 = vld [vmem:[%s1 + $0x4] sm:$0xf]
        %v582 = vld [vmem:[%s1 + $0x8] sm:$0xf]
        %v583 = vld [vmem:[%s1 + $0xc] sm:$0xf]
        %v584 = vld [vmem:[%s1 + $0x10] sm:$0xf]
        %v585 = vld [vmem:[%s1 + $0x14] sm:$0xf]
        %v586 = vld [vmem:[%s1 + $0x18] sm:$0xf]
        %v587 = vld [vmem:[%s1 + $0x1c] sm:$0xf]
        %v588 = vld [vmem:[%s1 + $0x20] sm:$0xf]
        %v589 = vld [vmem:[%s1 + $0x24] sm:$0xf]
        %v590 = vld [vmem:[%s1 + $0x28] sm:$0xf]
        %v591 = vld [vmem:[%s1 + $0x2c] sm:$0xf]
        %v592 = vld [vmem:[%s1 + $0x30] sm:$0xf]
        %v593 = vld [vmem:[%s1 + $0x34] sm:$0xf]
        %v594 = vld [vmem:[%s1 + $0x38] sm:$0xf]
        %v595 = vld [vmem:[%s1 + $0x3c] sm:$0xf]
        %v596 = vld [vmem:[%s1 + $0x40] sm:$0xf]
        %v597 = vld [vmem:[%s1 + $0x44] sm:$0xf]
        %v598 = vld [vmem:[%s1 + $0x48] sm:$0xf]
        %v599 = vld [vmem:[%s1 + $0x4c] sm:$0xf]
        %v600 = vld [vmem:[%s1 + $0x50] sm:$0xf]
        %v601 = vld [vmem:[%s1 + $0x54] sm:$0xf]
        %v602 = vld [vmem:[%s1 + $0x58] sm:$0xf]
        %v603 = vld [vmem:[%s1 + $0x5c] sm:$0xf]
        %v604 = vld [vmem:[%s1 + $0x60] sm:$0xf]
        %v605 = vld [vmem:[%s1 + $0x64] sm:$0xf]
        %v606 = vld [vmem:[%s1 + $0x68] sm:$0xf]
        %v607 = vld [vmem:[%s1 + $0x6c] sm:$0xf]
        %v608 = vld [vmem:[%s1 + $0x70] sm:$0xf]
        %v609 = vld [vmem:[%s1 + $0x74] sm:$0xf]
        %v610 = vld [vmem:[%s1 + $0x78] sm:$0xf]
        %v611 = vld [vmem:[%s1 + $0x7c] sm:$0xf]
        %v612 = vld [vmem:[%s1 + $0x80] sm:$0xf]
        %v613 = vld [vmem:[%s1 + $0x84] sm:$0xf]
        %v614 = vld [vmem:[%s1 + $0x88] sm:$0xf]
        %v615 = vld [vmem:[%s1 + $0x8c] sm:$0xf]
        %v616 = vld [vmem:[%s1 + $0x90] sm:$0xf]
        %v617 = vld [vmem:[%s1 + $0x94] sm:$0xf]
        %v618 = vld [vmem:[%s1 + $0x98] sm:$0xf]
        %v619 = vld [vmem:[%s1 + $0x9c] sm:$0xf]
        %v620 = vld [vmem:[%s1 + $0xa0] sm:$0xf]
        %v621 = vld [vmem:[%s1 + $0xa4] sm:$0xf]
        %v622 = vld [vmem:[%s1 + $0xa8] sm:$0xf]
        %v623 = vld [vmem:[%s1 + $0xac] sm:$0xf]
        %v624 = vld [vmem:[%s1 + $0xb0] sm:$0xf]
        %v625 = vld [vmem:[%s1 + $0xb4] sm:$0xf]
        %v626 = vld [vmem:[%s1 + $0xb8] sm:$0xf]
        %v627 = vld [vmem:[%s1 + $0xbc] sm:$0xf]
        %v628 = vld [vmem:[%s1 + $0xc0] sm:$0xf]
        %v629 = vld [vmem:[%s1 + $0xc4] sm:$0xf]
        %v630 = vld [vmem:[%s1 + $0xc8] sm:$0xf]
        %v631 = vld [vmem:[%s1 + $0xcc] sm:$0xf]
        %v632 = vld [vmem:[%s1 + $0xd0] sm:$0xf]
        %v633 = vld [vmem:[%s1 + $0xd4] sm:$0xf]
        %v634 = vld [vmem:[%s1 + $0xd8] sm:$0xf]
        %v635 = vld [vmem:[%s1 + $0xdc] sm:$0xf]
        %v636 = vld [vmem:[%s1 + $0xe0] sm:$0xf]
        %v637 = vld [vmem:[%s1 + $0xe4] sm:$0xf]
        %v638 = vld [vmem:[%s1 + $0xe8] sm:$0xf]
        %v639 = vld [vmem:[%s1 + $0xec] sm:$0xf]
        %v640 = vld [vmem:[%s1 + $0xf0] sm:$0xf]
        %v641 = vld [vmem:[%s1 + $0xf4] sm:$0xf]
        %v642 = vld [vmem:[%s1 + $0xf8] sm:$0xf]
        %v643 = vld [vmem:[%s1 + $0xfc] sm:$0xf]
        %v644 = vld [vmem:[%s1 + $0x100] sm:$0xf]
        %v645 = vld [vmem:[%s1 + $0x104] sm:$0xf]
        %v646 = vld [vmem:[%s1 + $0x108] sm:$0xf]
        %v647 = vld [vmem:[%s1 + $0x10c] sm:$0xf]
        %v648 = vld [vmem:[%s1 + $0x110] sm:$0xf]
        %v649 = vld [vmem:[%s1 + $0x114] sm:$0xf]
        %v650 = vld [vmem:[%s1 + $0x118] sm:$0xf]
        %v651 = vld [vmem:[%s1 + $0x11c] sm:$0xf]
        %v652 = vld [vmem:[%s1 + $0x120] sm:$0xf]
        %v653 = vld [vmem:[%s1 + $0x124] sm:$0xf]
        %v654 = vld [vmem:[%s1 + $0x128] sm:$0xf]
        %v655 = vld [vmem:[%s1 + $0x12c] sm:$0xf]
        %v656 = vld [vmem:[%s1 + $0x130] sm:$0xf]
        %v657 = vld [vmem:[%s1 + $0x134] sm:$0xf]
        %v658 = vld [vmem:[%s1 + $0x138] sm:$0xf]
        %v659 = vld [vmem:[%s1 + $0x13c] sm:$0xf]
        %v660 = vld [vmem:[%s1 + $0x140] sm:$0xf]
        %v661 = vld [vmem:[%s1 + $0x144] sm:$0xf]
        %v662 = vld [vmem:[%s1 + $0x148] sm:$0xf]
        %v663 = vld [vmem:[%s1 + $0x14c] sm:$0xf]
        %v664 = vld [vmem:[%s1 + $0x150] sm:$0xf]
        %v665 = vld [vmem:[%s1 + $0x154] sm:$0xf]
        %v666 = vld [vmem:[%s1 + $0x158] sm:$0xf]
        %v667 = vld [vmem:[%s1 + $0x15c] sm:$0xf]
        %v668 = vld [vmem:[%s1 + $0x160] sm:$0xf]
        %v669 = vld [vmem:[%s1 + $0x164] sm:$0xf]
        %v670 = vld [vmem:[%s1 + $0x168] sm:$0xf]
        %v671 = vld [vmem:[%s1 + $0x16c] sm:$0xf]
        %v672 = vld [vmem:[%s1 + $0x170] sm:$0xf]
        %v673 = vld [vmem:[%s1 + $0x174] sm:$0xf]
        %v674 = vld [vmem:[%s1 + $0x178] sm:$0xf]
        %v675 = vld [vmem:[%s1 + $0x17c] sm:$0xf]
        %v676 = vld [vmem:[%s1 + $0x180] sm:$0xf]
        %v677 = vld [vmem:[%s1 + $0x184] sm:$0xf]
        %v678 = vld [vmem:[%s1 + $0x188] sm:$0xf]
        %v679 = vld [vmem:[%s1 + $0x18c] sm:$0xf]
        %v680 = vld [vmem:[%s1 + $0x190] sm:$0xf]
        %v681 = vld [vmem:[%s1 + $0x194] sm:$0xf]
        %v682 = vld [vmem:[%s1 + $0x198] sm:$0xf]
        %v683 = vld [vmem:[%s1 + $0x19c] sm:$0xf]
        %v684 = vld [vmem:[%s1 + $0x1a0] sm:$0xf]
        %v685 = vld [vmem:[%s1 + $0x1a4] sm:$0xf]
        %v686 = vld [vmem:[%s1 + $0x1a8] sm:$0xf]
        %v687 = vld [vmem:[%s1 + $0x1ac] sm:$0xf]
        %v688 = vld [vmem:[%s1 + $0x1b0] sm:$0xf]
        %v689 = vld [vmem:[%s1 + $0x1b4] sm:$0xf]
        %v690 = vld [vmem:[%s1 + $0x1b8] sm:$0xf]
        %v691 = vld [vmem:[%s1 + $0x1bc] sm:$0xf]
        %v692 = vld [vmem:[%s1 + $0x1c0] sm:$0xf]
        %v693 = vld [vmem:[%s1 + $0x1c4] sm:$0xf]
        %v694 = vld [vmem:[%s1 + $0x1c8] sm:$0xf]
        %v695 = vld [vmem:[%s1 + $0x1cc] sm:$0xf]
        %v696 = vld [vmem:[%s1 + $0x1d0] sm:$0xf]
        %v697 = vld [vmem:[%s1 + $0x1d4] sm:$0xf]
        %v698 = vld [vmem:[%s1 + $0x1d8] sm:$0xf]
        %v699 = vld [vmem:[%s1 + $0x1dc] sm:$0xf]
        %v700 = vld [vmem:[%s1 + $0x1e0] sm:$0xf]
        %v701 = vld [vmem:[%s1 + $0x1e4] sm:$0xf]
        %v702 = vld [vmem:[%s1 + $0x1e8] sm:$0xf]
        %v703 = vld [vmem:[%s1 + $0x1ec] sm:$0xf]
        %v704 = vld [vmem:[%s1 + $0x1f0] sm:$0xf]
        %v705 = vld [vmem:[%s1 + $0x1f4] sm:$0xf]
        %v706 = vld [vmem:[%s1 + $0x1f8] sm:$0xf]
        %v707 = vld [vmem:[%s1 + $0x1fc] sm:$0xf]
        %v708 = vld [vmem:[%s1 + $0x200] sm:$0xf]
        %v709 = vld [vmem:[%s1 + $0x204] sm:$0xf]
        %v710 = vld [vmem:[%s1 + $0x208] sm:$0xf]
        %v711 = vld [vmem:[%s1 + $0x20c] sm:$0xf]
        %v712 = vld [vmem:[%s1 + $0x210] sm:$0xf]
        %v713 = vld [vmem:[%s1 + $0x214] sm:$0xf]
        %v714 = vld [vmem:[%s1 + $0x218] sm:$0xf]
        %v715 = vld [vmem:[%s1 + $0x21c] sm:$0xf]
        %v716 = vld [vmem:[%s1 + $0x220] sm:$0xf]
        %v717 = vld [vmem:[%s1 + $0x224] sm:$0xf]
        %v718 = vld [vmem:[%s1 + $0x228] sm:$0xf]
        %v719 = vld [vmem:[%s1 + $0x22c] sm:$0xf]
        %v720 = vld [vmem:[%s1 + $0x230] sm:$0xf]
        %v721 = vld [vmem:[%s1 + $0x234] sm:$0xf]
        %v722 = vld [vmem:[%s1 + $0x238] sm:$0xf]
        %v723 = vld [vmem:[%s1 + $0x23c] sm:$0xf]
        %v724 = vld [vmem:[%s2] sm:$0x1]
        %v726 = vlaneseq
        %v727 = vshrl.u32 %v726, 7
        %v728 = vsub.s32 0, %v727
        %v729 = vrot.slane %v724, %v728
        %v875 = vunpack.c.l.b16 %v580
        %v876 = vunpack.c.l.b16 %v581
        %v877 = vunpack.c.l.b16 %v582
        %v878 = vunpack.c.l.b16 %v583
        %v879 = vunpack.c.l.b16 %v584
        %v880 = vunpack.c.l.b16 %v585
        %v881 = vunpack.c.l.b16 %v586
        %v882 = vunpack.c.l.b16 %v587
        %v883 = vunpack.c.l.b16 %v588
        %v884 = vunpack.c.l.b16 %v589
        %v885 = vunpack.c.l.b16 %v590
        %v886 = vunpack.c.l.b16 %v591
        %v887 = vunpack.c.l.b16 %v592
        %v888 = vunpack.c.l.b16 %v593
        %v889 = vunpack.c.l.b16 %v594
        %v890 = vunpack.c.l.b16 %v595
        %v891 = vunpack.c.l.b16 %v596
        %v892 = vunpack.c.l.b16 %v597
        %v893 = vunpack.c.l.b16 %v598
        %v894 = vunpack.c.l.b16 %v599
        %v895 = vunpack.c.l.b16 %v600
        %v896 = vunpack.c.l.b16 %v601
        %v897 = vunpack.c.l.b16 %v602
        %v898 = vunpack.c.l.b16 %v603
        %v899 = vunpack.c.l.b16 %v604
        %v900 = vunpack.c.l.b16 %v605
        %v901 = vunpack.c.l.b16 %v606
        %v902 = vunpack.c.l.b16 %v607
        %v903 = vunpack.c.l.b16 %v608
        %v904 = vunpack.c.l.b16 %v609
        %v905 = vunpack.c.l.b16 %v610
        %v906 = vunpack.c.l.b16 %v611
        %v907 = vunpack.c.l.b16 %v612
        %v908 = vunpack.c.l.b16 %v613
        %v909 = vunpack.c.l.b16 %v614
        %v910 = vunpack.c.l.b16 %v615
        %v911 = vunpack.c.l.b16 %v616
        %v912 = vunpack.c.l.b16 %v617
        %v913 = vunpack.c.l.b16 %v618
        %v914 = vunpack.c.l.b16 %v619
        %v915 = vunpack.c.l.b16 %v620
        %v916 = vunpack.c.l.b16 %v621
        %v917 = vunpack.c.l.b16 %v622
        %v918 = vunpack.c.l.b16 %v623
        %v919 = vunpack.c.l.b16 %v624
        %v920 = vunpack.c.l.b16 %v625
        %v921 = vunpack.c.l.b16 %v626
        %v922 = vunpack.c.l.b16 %v627
        %v923 = vunpack.c.l.b16 %v628
        %v924 = vunpack.c.l.b16 %v629
        %v925 = vunpack.c.l.b16 %v630
        %v926 = vunpack.c.l.b16 %v631
        %v927 = vunpack.c.l.b16 %v632
        %v928 = vunpack.c.l.b16 %v633
        %v929 = vunpack.c.l.b16 %v634
        %v930 = vunpack.c.l.b16 %v635
        %v931 = vunpack.c.l.b16 %v636
        %v932 = vunpack.c.l.b16 %v637
        %v933 = vunpack.c.l.b16 %v638
        %v934 = vunpack.c.l.b16 %v639
        %v935 = vunpack.c.l.b16 %v640
        %v936 = vunpack.c.l.b16 %v641
        %v937 = vunpack.c.l.b16 %v642
        %v938 = vunpack.c.l.b16 %v643
        %v939 = vunpack.c.l.b16 %v644
        %v940 = vunpack.c.l.b16 %v645
        %v941 = vunpack.c.l.b16 %v646
        %v942 = vunpack.c.l.b16 %v647
        %v943 = vunpack.c.l.b16 %v648
        %v944 = vunpack.c.l.b16 %v649
        %v945 = vunpack.c.l.b16 %v650
        %v946 = vunpack.c.l.b16 %v651
        %v947 = vunpack.c.l.b16 %v652
        %v948 = vunpack.c.l.b16 %v653
        %v949 = vunpack.c.l.b16 %v654
        %v950 = vunpack.c.l.b16 %v655
        %v951 = vunpack.c.l.b16 %v656
        %v952 = vunpack.c.l.b16 %v657
        %v953 = vunpack.c.l.b16 %v658
        %v954 = vunpack.c.l.b16 %v659
        %v955 = vunpack.c.l.b16 %v660
        %v956 = vunpack.c.l.b16 %v661
        %v957 = vunpack.c.l.b16 %v662
        %v958 = vunpack.c.l.b16 %v663
        %v959 = vunpack.c.l.b16 %v664
        %v960 = vunpack.c.l.b16 %v665
        %v961 = vunpack.c.l.b16 %v666
        %v962 = vunpack.c.l.b16 %v667
        %v963 = vunpack.c.l.b16 %v668
        %v964 = vunpack.c.l.b16 %v669
        %v965 = vunpack.c.l.b16 %v670
        %v966 = vunpack.c.l.b16 %v671
        %v967 = vunpack.c.l.b16 %v672
        %v968 = vunpack.c.l.b16 %v673
        %v969 = vunpack.c.l.b16 %v674
        %v970 = vunpack.c.l.b16 %v675
        %v971 = vunpack.c.l.b16 %v676
        %v972 = vunpack.c.l.b16 %v677
        %v973 = vunpack.c.l.b16 %v678
        %v974 = vunpack.c.l.b16 %v679
        %v975 = vunpack.c.l.b16 %v680
        %v976 = vunpack.c.l.b16 %v681
        %v977 = vunpack.c.l.b16 %v682
        %v978 = vunpack.c.l.b16 %v683
        %v979 = vunpack.c.l.b16 %v684
        %v980 = vunpack.c.l.b16 %v685
        %v981 = vunpack.c.l.b16 %v686
        %v982 = vunpack.c.l.b16 %v687
        %v983 = vunpack.c.l.b16 %v688
        %v984 = vunpack.c.l.b16 %v689
        %v985 = vunpack.c.l.b16 %v690
        %v986 = vunpack.c.l.b16 %v691
        %v987 = vunpack.c.l.b16 %v692
        %v988 = vunpack.c.l.b16 %v693
        %v989 = vunpack.c.l.b16 %v694
        %v990 = vunpack.c.l.b16 %v695
        %v991 = vunpack.c.l.b16 %v696
        %v992 = vunpack.c.l.b16 %v697
        %v993 = vunpack.c.l.b16 %v698
        %v994 = vunpack.c.l.b16 %v699
        %v995 = vunpack.c.l.b16 %v700
        %v996 = vunpack.c.l.b16 %v701
        %v997 = vunpack.c.l.b16 %v702
        %v998 = vunpack.c.l.b16 %v703
        %v999 = vunpack.c.l.b16 %v704
        %v1000 = vunpack.c.l.b16 %v705
        %v1001 = vunpack.c.l.b16 %v706
        %v1002 = vunpack.c.l.b16 %v707
        %v1003 = vunpack.c.l.b16 %v708
        %v1004 = vunpack.c.l.b16 %v709
        %v1005 = vunpack.c.l.b16 %v710
        %v1006 = vunpack.c.l.b16 %v711
        %v1007 = vunpack.c.l.b16 %v712
        %v1008 = vunpack.c.l.b16 %v713
        %v1009 = vunpack.c.l.b16 %v714
        %v1010 = vunpack.c.l.b16 %v715
        %v1011 = vunpack.c.l.b16 %v716
        %v1012 = vunpack.c.l.b16 %v717
        %v1013 = vunpack.c.l.b16 %v718
        %v1014 = vunpack.c.l.b16 %v719
        %v1015 = vunpack.c.l.b16 %v720
        %v1016 = vunpack.c.l.b16 %v721
        %v1017 = vunpack.c.l.b16 %v722
        %v1018 = vunpack.c.l.b16 %v723
        %v1019 = vpack.c.b16 %v876, %v875
        %v1020 = vpack.c.b16 %v878, %v877
        %v1021 = vpack.c.b16 %v880, %v879
        %v1022 = vpack.c.b16 %v882, %v881
        %v1023 = vpack.c.b16 %v884, %v883
        %v1024 = vpack.c.b16 %v886, %v885
        %v1025 = vpack.c.b16 %v888, %v887
        %v1026 = vpack.c.b16 %v890, %v889
        %v1027 = vpack.c.b16 %v892, %v891
        %v1028 = vpack.c.b16 %v894, %v893
        %v1029 = vpack.c.b16 %v896, %v895
        %v1030 = vpack.c.b16 %v898, %v897
        %v1031 = vpack.c.b16 %v900, %v899
        %v1032 = vpack.c.b16 %v902, %v901
        %v1033 = vpack.c.b16 %v904, %v903
        %v1034 = vpack.c.b16 %v906, %v905
        %v1035 = vpack.c.b16 %v908, %v907
        %v1036 = vpack.c.b16 %v910, %v909
        %v1037 = vpack.c.b16 %v912, %v911
        %v1038 = vpack.c.b16 %v914, %v913
        %v1039 = vpack.c.b16 %v916, %v915
        %v1040 = vpack.c.b16 %v918, %v917
        %v1041 = vpack.c.b16 %v920, %v919
        %v1042 = vpack.c.b16 %v922, %v921
        %v1043 = vpack.c.b16 %v924, %v923
        %v1044 = vpack.c.b16 %v926, %v925
        %v1045 = vpack.c.b16 %v928, %v927
        %v1046 = vpack.c.b16 %v930, %v929
        %v1047 = vpack.c.b16 %v932, %v931
        %v1048 = vpack.c.b16 %v934, %v933
        %v1049 = vpack.c.b16 %v936, %v935
        %v1050 = vpack.c.b16 %v938, %v937
        %v1051 = vpack.c.b16 %v940, %v939
        %v1052 = vpack.c.b16 %v942, %v941
        %v1053 = vpack.c.b16 %v944, %v943
        %v1054 = vpack.c.b16 %v946, %v945
        %v1055 = vpack.c.b16 %v948, %v947
        %v1056 = vpack.c.b16 %v950, %v949
        %v1057 = vpack.c.b16 %v952, %v951
        %v1058 = vpack.c.b16 %v954, %v953
        %v1059 = vpack.c.b16 %v956, %v955
        %v1060 = vpack.c.b16 %v958, %v957
        %v1061 = vpack.c.b16 %v960, %v959
        %v1062 = vpack.c.b16 %v962, %v961
        %v1063 = vpack.c.b16 %v964, %v963
        %v1064 = vpack.c.b16 %v966, %v965
        %v1065 = vpack.c.b16 %v968, %v967
        %v1066 = vpack.c.b16 %v970, %v969
        %v1067 = vpack.c.b16 %v972, %v971
        %v1068 = vpack.c.b16 %v974, %v973
        %v1069 = vpack.c.b16 %v976, %v975
        %v1070 = vpack.c.b16 %v978, %v977
        %v1071 = vpack.c.b16 %v980, %v979
        %v1072 = vpack.c.b16 %v982, %v981
        %v1073 = vpack.c.b16 %v984, %v983
        %v1074 = vpack.c.b16 %v986, %v985
        %v1075 = vpack.c.b16 %v988, %v987
        %v1076 = vpack.c.b16 %v990, %v989
        %v1077 = vpack.c.b16 %v992, %v991
        %v1078 = vpack.c.b16 %v994, %v993
        %v1079 = vpack.c.b16 %v996, %v995
        %v1080 = vpack.c.b16 %v998, %v997
        %v1081 = vpack.c.b16 %v1000, %v999
        %v1082 = vpack.c.b16 %v1002, %v1001
        %v1083 = vpack.c.b16 %v1004, %v1003
        %v1084 = vpack.c.b16 %v1006, %v1005
        %v1085 = vpack.c.b16 %v1008, %v1007
        %v1086 = vpack.c.b16 %v1010, %v1009
        %v1087 = vpack.c.b16 %v1012, %v1011
        %v1088 = vpack.c.b16 %v1014, %v1013
        %v1089 = vpack.c.b16 %v1016, %v1015
        %v1090 = vpack.c.b16 %v1018, %v1017
        %1163 = vmatprep.subr.bf16.mxu0 0
        %1164 = vmatpush1.bf16.msra.mxu0 %v1019
        %1165 = vmatprep.subr.bf16.mxu0 0
        %1166 = vmatpush1.bf16.msra.mxu0 %v1020
        %1167 = vmatprep.subr.bf16.mxu0 0
        %1168 = vmatpush1.bf16.msra.mxu0 %v1021
        %1169 = vmatprep.subr.bf16.mxu0 0
        %1170 = vmatpush1.bf16.msra.mxu0 %v1022
        %1171 = vmatprep.subr.bf16.mxu0 0
        %1172 = vmatpush1.bf16.msra.mxu0 %v1023
        %1173 = vmatprep.subr.bf16.mxu0 0
        %1174 = vmatpush1.bf16.msra.mxu0 %v1024
        %1175 = vmatprep.subr.bf16.mxu0 0
        %1176 = vmatpush1.bf16.msra.mxu0 %v1025
        %1177 = vmatprep.subr.bf16.mxu0 0
        %1178 = vmatpush1.bf16.msra.mxu0 %v1026
        %1179 = vmatprep.subr.bf16.mxu0 0
        %1180 = vmatpush1.bf16.msra.mxu0 %v1027
        %1181 = vmatprep.subr.bf16.mxu0 0
        %1182 = vmatpush1.bf16.msra.mxu0 %v1028
        %1183 = vmatprep.subr.bf16.mxu0 0
        %1184 = vmatpush1.bf16.msra.mxu0 %v1029
        %1185 = vmatprep.subr.bf16.mxu0 0
        %1186 = vmatpush1.bf16.msra.mxu0 %v1030
        %1187 = vmatprep.subr.bf16.mxu0 0
        %1188 = vmatpush1.bf16.msra.mxu0 %v1031
        %1189 = vmatprep.subr.bf16.mxu0 0
        %1190 = vmatpush1.bf16.msra.mxu0 %v1032
        %1191 = vmatprep.subr.bf16.mxu0 0
        %1192 = vmatpush1.bf16.msra.mxu0 %v1033
        %1193 = vmatprep.subr.bf16.mxu0 0
        %1194 = vmatpush1.bf16.msra.mxu0 %v1034
        %1195 = vmatprep.mubr.bf16.mxu0 %v545
        %1196 = vmatmul.mubr.bf16.gmra.mrb[0].mxu0 %v544
        %v1197 = vpop.f32.mrb[0].mxu0
        %v1198 = vadd.f32 %v729, %v1197
        %v1199 = vpop.f32.mrb[0].mxu0
        %v1200 = vpop.f32.mrb[0].mxu0
        %v1201 = vadd.f32 %v729, %v1200
        %v1202 = vpop.f32.mrb[0].mxu0
        %1203 = vmatprep.mubr.bf16.mxu0 %v554
        %1204 = vmatmul.mubr.bf16.gmra.mrb[0].mxu0 %v553
        %v1205 = vpop.f32.mrb[0].mxu0
        %v1206 = vadd.f32 %v729, %v1205
        %v1207 = vpop.f32.mrb[0].mxu0
        %v1208 = vpop.f32.mrb[0].mxu0
        %v1209 = vadd.f32 %v729, %v1208
        %v1210 = vpop.f32.mrb[0].mxu0
        %1211 = vmatprep.mubr.bf16.mxu0 %v563
        %1212 = vmatmul.mubr.bf16.gmra.mrb[0].mxu0 %v562
        %v1213 = vpop.f32.mrb[0].mxu0
        %v1214 = vadd.f32 %v729, %v1213
        %v1215 = vpop.f32.mrb[0].mxu0
        %v1216 = vpop.f32.mrb[0].mxu0
        %v1217 = vadd.f32 %v729, %v1216
        %v1218 = vpop.f32.mrb[0].mxu0
        %1219 = vmatprep.mubr.bf16.mxu0 %v572
        %1220 = vmatmul.mubr.bf16.gmra.mrb[0].mxu0 %v571
        %v1221 = vpop.f32.mrb[0].mxu0
        %v1222 = vadd.f32 %v729, %v1221
        %v1223 = vpop.f32.mrb[0].mxu0
        %v1224 = vpop.f32.mrb[0].mxu0
        %v1225 = vadd.f32 %v729, %v1224
        %v1226 = vpop.f32.mrb[0].mxu0
        %1227 = vdwg.mxu0
        %1228 = vmatprep.subr.bf16.mxu0 0
        %1229 = vmatpush1.bf16.msra.mxu0 %v1035
        %1230 = vmatprep.subr.bf16.mxu0 0
        %1231 = vmatpush1.bf16.msra.mxu0 %v1036
        %1232 = vmatprep.subr.bf16.mxu0 0
        %1233 = vmatpush1.bf16.msra.mxu0 %v1037
        %1234 = vmatprep.subr.bf16.mxu0 0
        %1235 = vmatpush1.bf16.msra.mxu0 %v1038
        %1236 = vmatprep.subr.bf16.mxu0 0
        %1237 = vmatpush1.bf16.msra.mxu0 %v1039
        %1238 = vmatprep.subr.bf16.mxu0 0
        %1239 = vmatpush1.bf16.msra.mxu0 %v1040
        %1240 = vmatprep.subr.bf16.mxu0 0
        %1241 = vmatpush1.bf16.msra.mxu0 %v1041
        %1242 = vmatprep.subr.bf16.mxu0 0
        %1243 = vmatpush1.bf16.msra.mxu0 %v1042
        %1244 = vmatprep.subr.bf16.mxu0 0
        %1245 = vmatpush1.bf16.msra.mxu0 %v1043
        %1246 = vmatprep.subr.bf16.mxu0 0
        %1247 = vmatpush1.bf16.msra.mxu0 %v1044
        %1248 = vmatprep.subr.bf16.mxu0 0
        %1249 = vmatpush1.bf16.msra.mxu0 %v1045
        %1250 = vmatprep.subr.bf16.mxu0 0
        %1251 = vmatpush1.bf16.msra.mxu0 %v1046
        %1252 = vmatprep.subr.bf16.mxu0 0
        %1253 = vmatpush1.bf16.msra.mxu0 %v1047
        %1254 = vmatprep.subr.bf16.mxu0 0
        %1255 = vmatpush1.bf16.msra.mxu0 %v1048
        %1256 = vmatprep.subr.bf16.mxu0 0
        %1257 = vmatpush1.bf16.msra.mxu0 %v1049
        %1258 = vmatprep.subr.bf16.mxu0 0
        %1259 = vmatpush1.bf16.msra.mxu0 %v1050
        %1260 = vmatprep.mubr.bf16.mxu0 %v547
        %1261 = vmatmul.mubr.bf16.gmra.mrb[0].mxu0 %v546
        %v1262 = vpop.f32.mrb[0].mxu0
        %v1263 = vadd.f32 %v1198, %v1262
        %v1264 = vpop.f32.mrb[0].mxu0
        %v1265 = vpop.f32.mrb[0].mxu0
        %v1266 = vadd.f32 %v1201, %v1265
        %v1267 = vpop.f32.mrb[0].mxu0
        %1268 = vmatprep.mubr.bf16.mxu0 %v556
        %1269 = vmatmul.mubr.bf16.gmra.mrb[0].mxu0 %v555
        %v1270 = vpop.f32.mrb[0].mxu0
        %v1271 = vadd.f32 %v1206, %v1270
        %v1272 = vpop.f32.mrb[0].mxu0
        %v1273 = vpop.f32.mrb[0].mxu0
        %v1274 = vadd.f32 %v1209, %v1273
        %v1275 = vpop.f32.mrb[0].mxu0
        %1276 = vmatprep.mubr.bf16.mxu0 %v565
        %1277 = vmatmul.mubr.bf16.gmra.mrb[0].mxu0 %v564
        %v1278 = vpop.f32.mrb[0].mxu0
        %v1279 = vadd.f32 %v1214, %v1278
        %v1280 = vpop.f32.mrb[0].mxu0
        %v1281 = vpop.f32.mrb[0].mxu0
        %v1282 = vadd.f32 %v1217, %v1281
        %v1283 = vpop.f32.mrb[0].mxu0
        %1284 = vmatprep.mubr.bf16.mxu0 %v574
        %1285 = vmatmul.mubr.bf16.gmra.mrb[0].mxu0 %v573
        %v1286 = vpop.f32.mrb[0].mxu0
        %v1287 = vadd.f32 %v1222, %v1286
        %v1288 = vpop.f32.mrb[0].mxu0
        %v1289 = vpop.f32.mrb[0].mxu0
        %v1290 = vadd.f32 %v1225, %v1289
        %v1291 = vpop.f32.mrb[0].mxu0
        %1292 = vdwg.mxu0
        %1293 = vmatprep.subr.bf16.mxu0 0
        %1294 = vmatpush1.bf16.msra.mxu0 %v1051
        %1295 = vmatprep.subr.bf16.mxu0 0
        %1296 = vmatpush1.bf16.msra.mxu0 %v1052
        %1297 = vmatprep.subr.bf16.mxu0 0
        %1298 = vmatpush1.bf16.msra.mxu0 %v1053
        %1299 = vmatprep.subr.bf16.mxu0 0
        %1300 = vmatpush1.bf16.msra.mxu0 %v1054
        %1301 = vmatprep.subr.bf16.mxu0 0
        %1302 = vmatpush1.bf16.msra.mxu0 %v1055
        %1303 = vmatprep.subr.bf16.mxu0 0
        %1304 = vmatpush1.bf16.msra.mxu0 %v1056
        %1305 = vmatprep.subr.bf16.mxu0 0
        %1306 = vmatpush1.bf16.msra.mxu0 %v1057
        %1307 = vmatprep.subr.bf16.mxu0 0
        %1308 = vmatpush1.bf16.msra.mxu0 %v1058
        %1309 = vmatprep.subr.bf16.mxu0 0
        %1310 = vmatpush1.bf16.msra.mxu0 %v1059
        %1311 = vmatprep.subr.bf16.mxu0 0
        %1312 = vmatpush1.bf16.msra.mxu0 %v1060
        %1313 = vmatprep.subr.bf16.mxu0 0
        %1314 = vmatpush1.bf16.msra.mxu0 %v1061
        %1315 = vmatprep.subr.bf16.mxu0 0
        %1316 = vmatpush1.bf16.msra.mxu0 %v1062
        %1317 = vmatprep.subr.bf16.mxu0 0
        %1318 = vmatpush1.bf16.msra.mxu0 %v1063
        %1319 = vmatprep.subr.bf16.mxu0 0
        %1320 = vmatpush1.bf16.msra.mxu0 %v1064
        %1321 = vmatprep.subr.bf16.mxu0 0
        %1322 = vmatpush1.bf16.msra.mxu0 %v1065
        %1323 = vmatprep.subr.bf16.mxu0 0
        %1324 = vmatpush1.bf16.msra.mxu0 %v1066
        %1325 = vmatprep.mubr.bf16.mxu0 %v549
        %1326 = vmatmul.mubr.bf16.gmra.mrb[0].mxu0 %v548
        %v1327 = vpop.f32.mrb[0].mxu0
        %v1328 = vadd.f32 %v1263, %v1327
        %v1329 = vpop.f32.mrb[0].mxu0
        %v1330 = vpop.f32.mrb[0].mxu0
        %v1331 = vadd.f32 %v1266, %v1330
        %v1332 = vpop.f32.mrb[0].mxu0
        %1333 = vmatprep.mubr.bf16.mxu0 %v558
        %1334 = vmatmul.mubr.bf16.gmra.mrb[0].mxu0 %v557
        %v1335 = vpop.f32.mrb[0].mxu0
        %v1336 = vadd.f32 %v1271, %v1335
        %v1337 = vpop.f32.mrb[0].mxu0
        %v1338 = vpop.f32.mrb[0].mxu0
        %v1339 = vadd.f32 %v1274, %v1338
        %v1340 = vpop.f32.mrb[0].mxu0
        %1341 = vmatprep.mubr.bf16.mxu0 %v567
        %1342 = vmatmul.mubr.bf16.gmra.mrb[0].mxu0 %v566
        %v1343 = vpop.f32.mrb[0].mxu0
        %v1344 = vadd.f32 %v1279, %v1343
        %v1345 = vpop.f32.mrb[0].mxu0
        %v1346 = vpop.f32.mrb[0].mxu0
        %v1347 = vadd.f32 %v1282, %v1346
        %v1348 = vpop.f32.mrb[0].mxu0
        %1349 = vmatprep.mubr.bf16.mxu0 %v576
        %1350 = vmatmul.mubr.bf16.gmra.mrb[0].mxu0 %v575
        %v1351 = vpop.f32.mrb[0].mxu0
        %v1352 = vadd.f32 %v1287, %v1351
        %v1353 = vpop.f32.mrb[0].mxu0
        %v1354 = vpop.f32.mrb[0].mxu0
        %v1355 = vadd.f32 %v1290, %v1354
        %v1356 = vpop.f32.mrb[0].mxu0
        %1357 = vdwg.mxu0
        %1358 = vmatprep.subr.bf16.mxu0 0
        %1359 = vmatpush1.bf16.msra.mxu0 %v1067
        %1360 = vmatprep.subr.bf16.mxu0 0
        %1361 = vmatpush1.bf16.msra.mxu0 %v1068
        %1362 = vmatprep.subr.bf16.mxu0 0
        %1363 = vmatpush1.bf16.msra.mxu0 %v1069
        %1364 = vmatprep.subr.bf16.mxu0 0
        %1365 = vmatpush1.bf16.msra.mxu0 %v1070
        %1366 = vmatprep.subr.bf16.mxu0 0
        %1367 = vmatpush1.bf16.msra.mxu0 %v1071
        %1368 = vmatprep.subr.bf16.mxu0 0
        %1369 = vmatpush1.bf16.msra.mxu0 %v1072
        %1370 = vmatprep.subr.bf16.mxu0 0
        %1371 = vmatpush1.bf16.msra.mxu0 %v1073
        %1372 = vmatprep.subr.bf16.mxu0 0
        %1373 = vmatpush1.bf16.msra.mxu0 %v1074
        %1374 = vmatprep.subr.bf16.mxu0 0
        %1375 = vmatpush1.bf16.msra.mxu0 %v1075
        %1376 = vmatprep.subr.bf16.mxu0 0
        %1377 = vmatpush1.bf16.msra.mxu0 %v1076
        %1378 = vmatprep.subr.bf16.mxu0 0
        %1379 = vmatpush1.bf16.msra.mxu0 %v1077
        %1380 = vmatprep.subr.bf16.mxu0 0
        %1381 = vmatpush1.bf16.msra.mxu0 %v1078
        %1382 = vmatprep.subr.bf16.mxu0 0
        %1383 = vmatpush1.bf16.msra.mxu0 %v1079
        %1384 = vmatprep.subr.bf16.mxu0 0
        %1385 = vmatpush1.bf16.msra.mxu0 %v1080
        %1386 = vmatprep.subr.bf16.mxu0 0
        %1387 = vmatpush1.bf16.msra.mxu0 %v1081
        %1388 = vmatprep.subr.bf16.mxu0 0
        %1389 = vmatpush1.bf16.msra.mxu0 %v1082
        %1390 = vmatprep.mubr.bf16.mxu0 %v551
        %1391 = vmatmul.mubr.bf16.gmra.mrb[0].mxu0 %v550
        %v1392 = vpop.f32.mrb[0].mxu0
        %v1393 = vadd.f32 %v1328, %v1392
        %v1394 = vpop.f32.mrb[0].mxu0
        %v1395 = vpop.f32.mrb[0].mxu0
        %v1396 = vadd.f32 %v1331, %v1395
        %v1397 = vpop.f32.mrb[0].mxu0
        %1398 = vmatprep.mubr.bf16.mxu0 %v560
        %1399 = vmatmul.mubr.bf16.gmra.mrb[0].mxu0 %v559
        %v1400 = vpop.f32.mrb[0].mxu0
        %v1401 = vadd.f32 %v1336, %v1400
        %v1402 = vpop.f32.mrb[0].mxu0
        %v1403 = vpop.f32.mrb[0].mxu0
        %v1404 = vadd.f32 %v1339, %v1403
        %v1405 = vpop.f32.mrb[0].mxu0
        %1406 = vmatprep.mubr.bf16.mxu0 %v569
        %1407 = vmatmul.mubr.bf16.gmra.mrb[0].mxu0 %v568
        %v1408 = vpop.f32.mrb[0].mxu0
        %v1409 = vadd.f32 %v1344, %v1408
        %v1410 = vpop.f32.mrb[0].mxu0
        %v1411 = vpop.f32.mrb[0].mxu0
        %v1412 = vadd.f32 %v1347, %v1411
        %v1413 = vpop.f32.mrb[0].mxu0
        %1414 = vmatprep.mubr.bf16.mxu0 %v578
        %1415 = vmatmul.mubr.bf16.gmra.mrb[0].mxu0 %v577
        %v1416 = vpop.f32.mrb[0].mxu0
        %v1417 = vadd.f32 %v1352, %v1416
        %v1418 = vpop.f32.mrb[0].mxu0
        %v1419 = vpop.f32.mrb[0].mxu0
        %v1420 = vadd.f32 %v1355, %v1419
        %v1421 = vpop.f32.mrb[0].mxu0
        %1422 = vdwg.mxu0
        %1423 = vmatprep.subr.bf16.mxu0 0
        %1424 = vmatpush1.bf16.msra.mxu0 %v1083
        %1425 = vmatprep.subr.bf16.mxu0 0
        %1426 = vmatpush1.bf16.msra.mxu0 %v1084
        %1427 = vmatprep.subr.bf16.mxu0 0
        %1428 = vmatpush1.bf16.msra.mxu0 %v1085
        %1429 = vmatprep.subr.bf16.mxu0 0
        %1430 = vmatpush1.bf16.msra.mxu0 %v1086
        %1431 = vmatprep.subr.bf16.mxu0 0
        %1432 = vmatpush1.bf16.msra.mxu0 %v1087
        %1433 = vmatprep.subr.bf16.mxu0 0
        %1434 = vmatpush1.bf16.msra.mxu0 %v1088
        %1435 = vmatprep.subr.bf16.mxu0 0
        %1436 = vmatpush1.bf16.msra.mxu0 %v1089
        %1437 = vmatprep.subr.bf16.mxu0 0
        %1438 = vmatpush1.bf16.msra.mxu0 %v1090
        %1439 = vmatprep.subr.bf16.mxu0 0
        %1440 = vmatpush1.bf16.msra.mxu0 0
        %1441 = vmatprep.subr.bf16.mxu0 0
        %1442 = vmatpush1.bf16.msra.mxu0 0
        %1443 = vmatprep.subr.bf16.mxu0 0
        %1444 = vmatpush1.bf16.msra.mxu0 0
        %1445 = vmatprep.subr.bf16.mxu0 0
        %1446 = vmatpush1.bf16.msra.mxu0 0
        %1447 = vmatprep.subr.bf16.mxu0 0
        %1448 = vmatpush1.bf16.msra.mxu0 0
        %1449 = vmatprep.subr.bf16.mxu0 0
        %1450 = vmatpush1.bf16.msra.mxu0 0
        %1451 = vmatprep.subr.bf16.mxu0 0
        %1452 = vmatpush1.bf16.msra.mxu0 0
        %1453 = vmatprep.subr.bf16.mxu0 0
        %1454 = vmatpush1.bf16.msra.mxu0 0
        %1455 = vmatprep.mubr.bf16.mxu0 0
        %1456 = vmatmul.mubr.bf16.gmra.mrb[0].mxu0 %v552
        %v1457 = vpop.f32.mrb[0].mxu0
        %v1458 = vadd.f32 %v1393, %v1457
        %v1459 = vpop.f32.mrb[0].mxu0
        %v1460 = vpop.f32.mrb[0].mxu0
        %v1461 = vadd.f32 %v1396, %v1460
        %v1462 = vpop.f32.mrb[0].mxu0
        %1463 = vmatprep.mubr.bf16.mxu0 0
        %1464 = vmatmul.mubr.bf16.gmra.mrb[0].mxu0 %v561
        %v1465 = vpop.f32.mrb[0].mxu0
        %v1466 = vadd.f32 %v1401, %v1465
        %v1467 = vpop.f32.mrb[0].mxu0
        %v1468 = vpop.f32.mrb[0].mxu0
        %v1469 = vadd.f32 %v1404, %v1468
        %v1470 = vpop.f32.mrb[0].mxu0
        %1471 = vmatprep.mubr.bf16.mxu0 0
        %1472 = vmatmul.mubr.bf16.gmra.mrb[0].mxu0 %v570
        %v1473 = vpop.f32.mrb[0].mxu0
        %v1474 = vadd.f32 %v1409, %v1473
        %v1475 = vpop.f32.mrb[0].mxu0
        %v1476 = vpop.f32.mrb[0].mxu0
        %v1477 = vadd.f32 %v1412, %v1476
        %v1478 = vpop.f32.mrb[0].mxu0
        %1479 = vmatprep.mubr.bf16.mxu0 0
        %1480 = vmatmul.mubr.bf16.gmra.mrb[0].mxu0 %v579
        %v1481 = vpop.f32.mrb[0].mxu0
        %v1482 = vadd.f32 %v1417, %v1481
        %v1483 = vpop.f32.mrb[0].mxu0
        %v1484 = vpop.f32.mrb[0].mxu0
        %v1485 = vadd.f32 %v1420, %v1484
        %v1486 = vpop.f32.mrb[0].mxu0
        %1487 = vdwg.mxu0
        %1488 = vst [vmem:[%s248] sm:$0xff] %v1458
        %1489 = vst [vmem:[%s248 + $0x8] sm:$0xff] %v1461
        %1490 = vst [vmem:[%s248 + $0x10] sm:$0xff] %v1466
        %1491 = vst [vmem:[%s248 + $0x18] sm:$0xff] %v1469
        %1492 = vst [vmem:[%s248 + $0x20] sm:$0xff] %v1474
        %1493 = vst [vmem:[%s248 + $0x28] sm:$0xff] %v1477
        %1494 = vst [vmem:[%s248 + $0x30] sm:$0xff] %v1482
        %1495 = vst [vmem:[%s248 + $0x38] sm:$0xff] %v1485
        %v1496 = vmax.f32 %v1458, 0.0
        %v1497 = vmax.f32 %v1461, 0.0
        %v1498 = vmax.f32 %v1466, 0.0
        %v1499 = vmax.f32 %v1469, 0.0
        %v1500 = vmax.f32 %v1474, 0.0
        %v1501 = vmax.f32 %v1477, 0.0
        %v1502 = vmax.f32 %v1482, 0.0
        %v1503 = vmax.f32 %v1485, 0.0
        %1504 = vst [vmem:[#allocation3] sm:$0xff] 0.0
        %1505 = vst [vmem:[#allocation3 + $0x8] sm:$0x3] 0.0
        %s1506 = scalar_lea.vmem [#allocation3], 144
        %1507 = vst [vmem:[%s1506] sm:$0xff] 0.0
        %1508 = vst [vmem:[%s1506 + $0x8] sm:$0x3] 0.0
        %1509 = vst [vmem:[#allocation3] sm:$0x1] 0.0
        %1510 = vst [vmem:[#allocation3 + $0x10] sm:$0x1] 0.0
        %1511 = vst [vmem:[#allocation3 + $0x20] sm:$0x1] 0.0
        %1512 = vst [vmem:[#allocation3 + $0x30] sm:$0x1] 0.0
        %1513 = vst [vmem:[#allocation3 + $0x40] sm:$0x1] 0.0
        %1514 = vst [vmem:[#allocation3 + $0x50] sm:$0x1] 0.0
        %1515 = vst [vmem:[#allocation3 + $0x60] sm:$0x1] 0.0
        %1516 = vst [vmem:[#allocation3 + $0x70] sm:$0x1] 0.0
        %1517 = vst [vmem:[#allocation3 + $0x80] sm:$0x1] 0.0
        %1518 = vst [vmem:[#allocation3 + $0x90] sm:$0x1] 0.0
        %1519 = vst [vmem:[#allocation3 + $0x9] sm:$0x1] 0.0
        %1520 = vst [vmem:[#allocation3 + $0x19] sm:$0x1] 0.0
        %1521 = vst [vmem:[#allocation3 + $0x29] sm:$0x1] 0.0
        %1522 = vst [vmem:[#allocation3 + $0x39] sm:$0x1] 0.0
        %1523 = vst [vmem:[#allocation3 + $0x49] sm:$0x1] 0.0
        %1524 = vst [vmem:[#allocation3 + $0x59] sm:$0x1] 0.0
        %1525 = vst [vmem:[#allocation3 + $0x69] sm:$0x1] 0.0
        %1526 = vst [vmem:[#allocation3 + $0x79] sm:$0x1] 0.0
        %1527 = vst [vmem:[#allocation3 + $0x89] sm:$0x1] 0.0
        %1528 = vst [vmem:[#allocation3 + $0x99] sm:$0x1] 0.0
        %s1529 = scalar_lea.vmem [#allocation3], 16
        %1530 = vst [vmem:[%s1529 + $0x1] sm:$0xff] %v1496
        %1531 = vst [vmem:[%s1529 + $0x11] sm:$0xff] %v1497
        %1532 = vst [vmem:[%s1529 + $0x21] sm:$0xff] %v1498
        %1533 = vst [vmem:[%s1529 + $0x31] sm:$0xff] %v1499
        %1534 = vst [vmem:[%s1529 + $0x41] sm:$0xff] %v1500
        %1535 = vst [vmem:[%s1529 + $0x51] sm:$0xff] %v1501
        %1536 = vst [vmem:[%s1529 + $0x61] sm:$0xff] %v1502
        %1537 = vst [vmem:[%s1529 + $0x71] sm:$0xff] %v1503
        %v1538 = vld [vmem:[#allocation3] ss:$2 sm:$0xf]
        %s1539 = scalar_lea.vmem [#allocation3], 32
        %v1540 = vld [vmem:[%s1539] ss:$2 sm:$0xf]
        %s1541 = scalar_lea.vmem [#allocation3], 64
        %v1542 = vld [vmem:[%s1541] ss:$2 sm:$0xf]
        %s1543 = scalar_lea.vmem [#allocation3], 96
        %v1544 = vld [vmem:[%s1543] ss:$2 sm:$0xf]
        %s1545 = scalar_lea.vmem [#allocation3], 1
        %v1546 = vld [vmem:[%s1545] ss:$2 sm:$0xf]
        %s1547 = scalar_lea.vmem [#allocation3], 33
        %v1548 = vld [vmem:[%s1547] ss:$2 sm:$0xf]
        %s1549 = scalar_lea.vmem [#allocation3], 65
        %v1550 = vld [vmem:[%s1549] ss:$2 sm:$0xf]
        %s1551 = scalar_lea.vmem [#allocation3], 97
        %v1552 = vld [vmem:[%s1551] ss:$2 sm:$0xf]
        %s1553 = scalar_lea.vmem [#allocation3], 2
        %v1554 = vld [vmem:[%s1553] ss:$2 sm:$0xf]
        %s1555 = scalar_lea.vmem [#allocation3], 34
        %v1556 = vld [vmem:[%s1555] ss:$2 sm:$0xf]
        %s1557 = scalar_lea.vmem [#allocation3], 66
        %v1558 = vld [vmem:[%s1557] ss:$2 sm:$0xf]
        %s1559 = scalar_lea.vmem [#allocation3], 98
        %v1560 = vld [vmem:[%s1559] ss:$2 sm:$0xf]
        %v1561 = vld [vmem:[%s1529] ss:$2 sm:$0xf]
        %s1562 = scalar_lea.vmem %s1529, 32 [#allocation3]
        %v1563 = vld [vmem:[%s1562] ss:$2 sm:$0xf]
        %s1564 = scalar_lea.vmem %s1529, 64 [#allocation3]
        %v1565 = vld [vmem:[%s1564] ss:$2 sm:$0xf]
        %s1566 = scalar_lea.vmem %s1529, 96 [#allocation3]
        %v1567 = vld [vmem:[%s1566] ss:$2 sm:$0xf]
        %s1568 = scalar_lea.vmem %s1529, 1 [#allocation3]
        %v1569 = vld [vmem:[%s1568] ss:$2 sm:$0xf]
        %s1570 = scalar_lea.vmem %s1529, 33 [#allocation3]
        %v1571 = vld [vmem:[%s1570] ss:$2 sm:$0xf]
        %s1572 = scalar_lea.vmem %s1529, 65 [#allocation3]
        %v1573 = vld [vmem:[%s1572] ss:$2 sm:$0xf]
        %s1574 = scalar_lea.vmem %s1529, 97 [#allocation3]
        %v1575 = vld [vmem:[%s1574] ss:$2 sm:$0xf]
        %s1576 = scalar_lea.vmem %s1529, 2 [#allocation3]
        %v1577 = vld [vmem:[%s1576] ss:$2 sm:$0xf]
        %s1578 = scalar_lea.vmem %s1529, 34 [#allocation3]
        %v1579 = vld [vmem:[%s1578] ss:$2 sm:$0xf]
        %s1580 = scalar_lea.vmem %s1529, 66 [#allocation3]
        %v1581 = vld [vmem:[%s1580] ss:$2 sm:$0xf]
        %s1582 = scalar_lea.vmem %s1529, 98 [#allocation3]
        %v1583 = vld [vmem:[%s1582] ss:$2 sm:$0xf]
        %s1584 = scalar_lea.vmem [#allocation3], 32
        %v1585 = vld [vmem:[%s1584] ss:$2 sm:$0xf]
        %s1586 = scalar_lea.vmem %s1584, 32 [#allocation3]
        %v1587 = vld [vmem:[%s1586] ss:$2 sm:$0xf]
        %s1588 = scalar_lea.vmem %s1584, 64 [#allocation3]
        %v1589 = vld [vmem:[%s1588] ss:$2 sm:$0xf]
        %s1590 = scalar_lea.vmem %s1584, 96 [#allocation3]
        %v1591 = vld [vmem:[%s1590] ss:$2 sm:$0xf]
        %s1592 = scalar_lea.vmem %s1584, 1 [#allocation3]
        %v1593 = vld [vmem:[%s1592] ss:$2 sm:$0xf]
        %s1594 = scalar_lea.vmem %s1584, 33 [#allocation3]
        %v1595 = vld [vmem:[%s1594] ss:$2 sm:$0xf]
        %s1596 = scalar_lea.vmem %s1584, 65 [#allocation3]
        %v1597 = vld [vmem:[%s1596] ss:$2 sm:$0xf]
        %s1598 = scalar_lea.vmem %s1584, 97 [#allocation3]
        %v1599 = vld [vmem:[%s1598] ss:$2 sm:$0xf]
        %s1600 = scalar_lea.vmem %s1584, 2 [#allocation3]
        %v1601 = vld [vmem:[%s1600] ss:$2 sm:$0xf]
        %s1602 = scalar_lea.vmem %s1584, 34 [#allocation3]
        %v1603 = vld [vmem:[%s1602] ss:$2 sm:$0xf]
        %s1604 = scalar_lea.vmem %s1584, 66 [#allocation3]
        %v1605 = vld [vmem:[%s1604] ss:$2 sm:$0xf]
        %s1606 = scalar_lea.vmem %s1584, 98 [#allocation3]
        %v1607 = vld [vmem:[%s1606] ss:$2 sm:$0xf]
        %v1612 = vcombine.low %v1538, %v1540
        %v1613 = vcombine.low %v1542, %v1544
        %v1620 = vcombine.low %v1546, %v1548
        %v1621 = vcombine.low %v1550, %v1552
        %v1628 = vcombine.low %v1554, %v1556
        %v1629 = vcombine.low %v1558, %v1560
        %v1636 = vcombine.low %v1561, %v1563
        %v1637 = vcombine.low %v1565, %v1567
        %v1644 = vcombine.low %v1569, %v1571
        %v1645 = vcombine.low %v1573, %v1575
        %v1652 = vcombine.low %v1577, %v1579
        %v1653 = vcombine.low %v1581, %v1583
        %v1660 = vcombine.low %v1585, %v1587
        %v1661 = vcombine.low %v1589, %v1591
        %v1668 = vcombine.low %v1593, %v1595
        %v1669 = vcombine.low %v1597, %v1599
        %v1676 = vcombine.low %v1601, %v1603
        %v1677 = vcombine.low %v1605, %v1607
        %v1680 = vpack.c.bf16 %v1613, %v1612
        %v1681 = vpack.c.bf16 %v1621, %v1620
        %v1682 = vpack.c.bf16 %v1629, %v1628
        %v1683 = vpack.c.bf16 %v1637, %v1636
        %v1684 = vpack.c.bf16 %v1645, %v1644
        %v1685 = vpack.c.bf16 %v1653, %v1652
        %v1686 = vpack.c.bf16 %v1661, %v1660
        %v1687 = vpack.c.bf16 %v1669, %v1668
        %v1688 = vpack.c.bf16 %v1677, %v1676
        %v1689 = vld [vmem:[%s3] sm:$0xf]
        %v1690 = vld [vmem:[%s3 + $0x4] sm:$0xf]
        %v1691 = vld [vmem:[%s3 + $0x8] sm:$0xf]
        %v1692 = vld [vmem:[%s3 + $0xc] sm:$0xf]
        %v1693 = vld [vmem:[%s3 + $0x10] sm:$0xf]
        %v1694 = vld [vmem:[%s3 + $0x14] sm:$0xf]
        %v1695 = vld [vmem:[%s3 + $0x18] sm:$0xf]
        %v1696 = vld [vmem:[%s3 + $0x1c] sm:$0xf]
        %v1697 = vld [vmem:[%s3 + $0x20] sm:$0xf]
        %v1698 = vld [vmem:[%s3 + $0x24] sm:$0xf]
        %v1699 = vld [vmem:[%s3 + $0x28] sm:$0xf]
        %v1700 = vld [vmem:[%s3 + $0x2c] sm:$0xf]
        %v1701 = vld [vmem:[%s3 + $0x30] sm:$0xf]
        %v1702 = vld [vmem:[%s3 + $0x34] sm:$0xf]
        %v1703 = vld [vmem:[%s3 + $0x38] sm:$0xf]
        %v1704 = vld [vmem:[%s3 + $0x3c] sm:$0xf]
        %v1705 = vld [vmem:[%s3 + $0x40] sm:$0xf]
        %v1706 = vld [vmem:[%s3 + $0x44] sm:$0xf]
        %v1707 = vld [vmem:[%s3 + $0x48] sm:$0xf]
        %v1708 = vld [vmem:[%s3 + $0x4c] sm:$0xf]
        %v1709 = vld [vmem:[%s3 + $0x50] sm:$0xf]
        %v1710 = vld [vmem:[%s3 + $0x54] sm:$0xf]
        %v1711 = vld [vmem:[%s3 + $0x58] sm:$0xf]
        %v1712 = vld [vmem:[%s3 + $0x5c] sm:$0xf]
        %v1713 = vld [vmem:[%s3 + $0x60] sm:$0xf]
        %v1714 = vld [vmem:[%s3 + $0x64] sm:$0xf]
        %v1715 = vld [vmem:[%s3 + $0x68] sm:$0xf]
        %v1716 = vld [vmem:[%s3 + $0x6c] sm:$0xf]
        %v1717 = vld [vmem:[%s3 + $0x70] sm:$0xf]
        %v1718 = vld [vmem:[%s3 + $0x74] sm:$0xf]
        %v1719 = vld [vmem:[%s3 + $0x78] sm:$0xf]
        %v1720 = vld [vmem:[%s3 + $0x7c] sm:$0xf]
        %v1721 = vld [vmem:[%s3 + $0x80] sm:$0xf]
        %v1722 = vld [vmem:[%s3 + $0x84] sm:$0xf]
        %v1723 = vld [vmem:[%s3 + $0x88] sm:$0xf]
        %v1724 = vld [vmem:[%s3 + $0x8c] sm:$0xf]
        %v1725 = vld [vmem:[%s3 + $0x90] sm:$0xf]
        %v1726 = vld [vmem:[%s3 + $0x94] sm:$0xf]
        %v1727 = vld [vmem:[%s3 + $0x98] sm:$0xf]
        %v1728 = vld [vmem:[%s3 + $0x9c] sm:$0xf]
        %v1729 = vld [vmem:[%s3 + $0xa0] sm:$0xf]
        %v1730 = vld [vmem:[%s3 + $0xa4] sm:$0xf]
        %v1731 = vld [vmem:[%s3 + $0xa8] sm:$0xf]
        %v1732 = vld [vmem:[%s3 + $0xac] sm:$0xf]
        %v1733 = vld [vmem:[%s3 + $0xb0] sm:$0xf]
        %v1734 = vld [vmem:[%s3 + $0xb4] sm:$0xf]
        %v1735 = vld [vmem:[%s3 + $0xb8] sm:$0xf]
        %v1736 = vld [vmem:[%s3 + $0xbc] sm:$0xf]
        %v1737 = vld [vmem:[%s3 + $0xc0] sm:$0xf]
        %v1738 = vld [vmem:[%s3 + $0xc4] sm:$0xf]
        %v1739 = vld [vmem:[%s3 + $0xc8] sm:$0xf]
        %v1740 = vld [vmem:[%s3 + $0xcc] sm:$0xf]
        %v1741 = vld [vmem:[%s3 + $0xd0] sm:$0xf]
        %v1742 = vld [vmem:[%s3 + $0xd4] sm:$0xf]
        %v1743 = vld [vmem:[%s3 + $0xd8] sm:$0xf]
        %v1744 = vld [vmem:[%s3 + $0xdc] sm:$0xf]
        %v1745 = vld [vmem:[%s3 + $0xe0] sm:$0xf]
        %v1746 = vld [vmem:[%s3 + $0xe4] sm:$0xf]
        %v1747 = vld [vmem:[%s3 + $0xe8] sm:$0xf]
        %v1748 = vld [vmem:[%s3 + $0xec] sm:$0xf]
        %v1749 = vld [vmem:[%s3 + $0xf0] sm:$0xf]
        %v1750 = vld [vmem:[%s3 + $0xf4] sm:$0xf]
        %v1751 = vld [vmem:[%s3 + $0xf8] sm:$0xf]
        %v1752 = vld [vmem:[%s3 + $0xfc] sm:$0xf]
        %v1753 = vld [vmem:[%s3 + $0x100] sm:$0xf]
        %v1754 = vld [vmem:[%s3 + $0x104] sm:$0xf]
        %v1755 = vld [vmem:[%s3 + $0x108] sm:$0xf]
        %v1756 = vld [vmem:[%s3 + $0x10c] sm:$0xf]
        %v1757 = vld [vmem:[%s3 + $0x110] sm:$0xf]
        %v1758 = vld [vmem:[%s3 + $0x114] sm:$0xf]
        %v1759 = vld [vmem:[%s3 + $0x118] sm:$0xf]
        %v1760 = vld [vmem:[%s3 + $0x11c] sm:$0xf]
        %v1761 = vld [vmem:[%s3 + $0x120] sm:$0xf]
        %v1762 = vld [vmem:[%s3 + $0x124] sm:$0xf]
        %v1763 = vld [vmem:[%s3 + $0x128] sm:$0xf]
        %v1764 = vld [vmem:[%s3 + $0x12c] sm:$0xf]
        %v1765 = vld [vmem:[%s3 + $0x130] sm:$0xf]
        %v1766 = vld [vmem:[%s3 + $0x134] sm:$0xf]
        %v1767 = vld [vmem:[%s3 + $0x138] sm:$0xf]
        %v1768 = vld [vmem:[%s3 + $0x13c] sm:$0xf]
        %v1769 = vld [vmem:[%s3 + $0x140] sm:$0xf]
        %v1770 = vld [vmem:[%s3 + $0x144] sm:$0xf]
        %v1771 = vld [vmem:[%s3 + $0x148] sm:$0xf]
        %v1772 = vld [vmem:[%s3 + $0x14c] sm:$0xf]
        %v1773 = vld [vmem:[%s3 + $0x150] sm:$0xf]
        %v1774 = vld [vmem:[%s3 + $0x154] sm:$0xf]
        %v1775 = vld [vmem:[%s3 + $0x158] sm:$0xf]
        %v1776 = vld [vmem:[%s3 + $0x15c] sm:$0xf]
        %v1777 = vld [vmem:[%s3 + $0x160] sm:$0xf]
        %v1778 = vld [vmem:[%s3 + $0x164] sm:$0xf]
        %v1779 = vld [vmem:[%s3 + $0x168] sm:$0xf]
        %v1780 = vld [vmem:[%s3 + $0x16c] sm:$0xf]
        %v1781 = vld [vmem:[%s3 + $0x170] sm:$0xf]
        %v1782 = vld [vmem:[%s3 + $0x174] sm:$0xf]
        %v1783 = vld [vmem:[%s3 + $0x178] sm:$0xf]
        %v1784 = vld [vmem:[%s3 + $0x17c] sm:$0xf]
        %v1785 = vld [vmem:[%s3 + $0x180] sm:$0xf]
        %v1786 = vld [vmem:[%s3 + $0x184] sm:$0xf]
        %v1787 = vld [vmem:[%s3 + $0x188] sm:$0xf]
        %v1788 = vld [vmem:[%s3 + $0x18c] sm:$0xf]
        %v1789 = vld [vmem:[%s3 + $0x190] sm:$0xf]
        %v1790 = vld [vmem:[%s3 + $0x194] sm:$0xf]
        %v1791 = vld [vmem:[%s3 + $0x198] sm:$0xf]
        %v1792 = vld [vmem:[%s3 + $0x19c] sm:$0xf]
        %v1793 = vld [vmem:[%s3 + $0x1a0] sm:$0xf]
        %v1794 = vld [vmem:[%s3 + $0x1a4] sm:$0xf]
        %v1795 = vld [vmem:[%s3 + $0x1a8] sm:$0xf]
        %v1796 = vld [vmem:[%s3 + $0x1ac] sm:$0xf]
        %v1797 = vld [vmem:[%s3 + $0x1b0] sm:$0xf]
        %v1798 = vld [vmem:[%s3 + $0x1b4] sm:$0xf]
        %v1799 = vld [vmem:[%s3 + $0x1b8] sm:$0xf]
        %v1800 = vld [vmem:[%s3 + $0x1bc] sm:$0xf]
        %v1801 = vld [vmem:[%s3 + $0x1c0] sm:$0xf]
        %v1802 = vld [vmem:[%s3 + $0x1c4] sm:$0xf]
        %v1803 = vld [vmem:[%s3 + $0x1c8] sm:$0xf]
        %v1804 = vld [vmem:[%s3 + $0x1cc] sm:$0xf]
        %v1805 = vld [vmem:[%s3 + $0x1d0] sm:$0xf]
        %v1806 = vld [vmem:[%s3 + $0x1d4] sm:$0xf]
        %v1807 = vld [vmem:[%s3 + $0x1d8] sm:$0xf]
        %v1808 = vld [vmem:[%s3 + $0x1dc] sm:$0xf]
        %v1809 = vld [vmem:[%s3 + $0x1e0] sm:$0xf]
        %v1810 = vld [vmem:[%s3 + $0x1e4] sm:$0xf]
        %v1811 = vld [vmem:[%s3 + $0x1e8] sm:$0xf]
        %v1812 = vld [vmem:[%s3 + $0x1ec] sm:$0xf]
        %v1813 = vld [vmem:[%s3 + $0x1f0] sm:$0xf]
        %v1814 = vld [vmem:[%s3 + $0x1f4] sm:$0xf]
        %v1815 = vld [vmem:[%s3 + $0x1f8] sm:$0xf]
        %v1816 = vld [vmem:[%s3 + $0x1fc] sm:$0xf]
        %v1817 = vld [vmem:[%s3 + $0x200] sm:$0xf]
        %v1818 = vld [vmem:[%s3 + $0x204] sm:$0xf]
        %v1819 = vld [vmem:[%s3 + $0x208] sm:$0xf]
        %v1820 = vld [vmem:[%s3 + $0x20c] sm:$0xf]
        %v1821 = vld [vmem:[%s3 + $0x210] sm:$0xf]
        %v1822 = vld [vmem:[%s3 + $0x214] sm:$0xf]
        %v1823 = vld [vmem:[%s3 + $0x218] sm:$0xf]
        %v1824 = vld [vmem:[%s3 + $0x21c] sm:$0xf]
        %v1825 = vld [vmem:[%s3 + $0x220] sm:$0xf]
        %v1826 = vld [vmem:[%s3 + $0x224] sm:$0xf]
        %v1827 = vld [vmem:[%s3 + $0x228] sm:$0xf]
        %v1828 = vld [vmem:[%s3 + $0x22c] sm:$0xf]
        %v1829 = vld [vmem:[%s3 + $0x230] sm:$0xf]
        %v1830 = vld [vmem:[%s3 + $0x234] sm:$0xf]
        %v1831 = vld [vmem:[%s3 + $0x238] sm:$0xf]
        %v1832 = vld [vmem:[%s3 + $0x23c] sm:$0xf]
        %v1833 = vld [vmem:[%s4] sm:$0x1]
        %v1835 = vlaneseq
        %v1836 = vshrl.u32 %v1835, 7
        %v1837 = vsub.s32 0, %v1836
        %v1838 = vrot.slane %v1833, %v1837
        %v1984 = vunpack.c.l.b16 %v1689
        %v1985 = vunpack.c.l.b16 %v1690
        %v1986 = vunpack.c.l.b16 %v1691
        %v1987 = vunpack.c.l.b16 %v1692
        %v1988 = vunpack.c.l.b16 %v1693
        %v1989 = vunpack.c.l.b16 %v1694
        %v1990 = vunpack.c.l.b16 %v1695
        %v1991 = vunpack.c.l.b16 %v1696
        %v1992 = vunpack.c.l.b16 %v1697
        %v1993 = vunpack.c.l.b16 %v1698
        %v1994 = vunpack.c.l.b16 %v1699
        %v1995 = vunpack.c.l.b16 %v1700
        %v1996 = vunpack.c.l.b16 %v1701
        %v1997 = vunpack.c.l.b16 %v1702
        %v1998 = vunpack.c.l.b16 %v1703
        %v1999 = vunpack.c.l.b16 %v1704
        %v2000 = vunpack.c.l.b16 %v1705
        %v2001 = vunpack.c.l.b16 %v1706
        %v2002 = vunpack.c.l.b16 %v1707
        %v2003 = vunpack.c.l.b16 %v1708
        %v2004 = vunpack.c.l.b16 %v1709
        %v2005 = vunpack.c.l.b16 %v1710
        %v2006 = vunpack.c.l.b16 %v1711
        %v2007 = vunpack.c.l.b16 %v1712
        %v2008 = vunpack.c.l.b16 %v1713
        %v2009 = vunpack.c.l.b16 %v1714
        %v2010 = vunpack.c.l.b16 %v1715
        %v2011 = vunpack.c.l.b16 %v1716
        %v2012 = vunpack.c.l.b16 %v1717
        %v2013 = vunpack.c.l.b16 %v1718
        %v2014 = vunpack.c.l.b16 %v1719
        %v2015 = vunpack.c.l.b16 %v1720
        %v2016 = vunpack.c.l.b16 %v1721
        %v2017 = vunpack.c.l.b16 %v1722
        %v2018 = vunpack.c.l.b16 %v1723
        %v2019 = vunpack.c.l.b16 %v1724
        %v2020 = vunpack.c.l.b16 %v1725
        %v2021 = vunpack.c.l.b16 %v1726
        %v2022 = vunpack.c.l.b16 %v1727
        %v2023 = vunpack.c.l.b16 %v1728
        %v2024 = vunpack.c.l.b16 %v1729
        %v2025 = vunpack.c.l.b16 %v1730
        %v2026 = vunpack.c.l.b16 %v1731
        %v2027 = vunpack.c.l.b16 %v1732
        %v2028 = vunpack.c.l.b16 %v1733
        %v2029 = vunpack.c.l.b16 %v1734
        %v2030 = vunpack.c.l.b16 %v1735
        %v2031 = vunpack.c.l.b16 %v1736
        %v2032 = vunpack.c.l.b16 %v1737
        %v2033 = vunpack.c.l.b16 %v1738
        %v2034 = vunpack.c.l.b16 %v1739
        %v2035 = vunpack.c.l.b16 %v1740
        %v2036 = vunpack.c.l.b16 %v1741
        %v2037 = vunpack.c.l.b16 %v1742
        %v2038 = vunpack.c.l.b16 %v1743
        %v2039 = vunpack.c.l.b16 %v1744
        %v2040 = vunpack.c.l.b16 %v1745
        %v2041 = vunpack.c.l.b16 %v1746
        %v2042 = vunpack.c.l.b16 %v1747
        %v2043 = vunpack.c.l.b16 %v1748
        %v2044 = vunpack.c.l.b16 %v1749
        %v2045 = vunpack.c.l.b16 %v1750
        %v2046 = vunpack.c.l.b16 %v1751
        %v2047 = vunpack.c.l.b16 %v1752
        %v2048 = vunpack.c.l.b16 %v1753
        %v2049 = vunpack.c.l.b16 %v1754
        %v2050 = vunpack.c.l.b16 %v1755
        %v2051 = vunpack.c.l.b16 %v1756
        %v2052 = vunpack.c.l.b16 %v1757
        %v2053 = vunpack.c.l.b16 %v1758
        %v2054 = vunpack.c.l.b16 %v1759
        %v2055 = vunpack.c.l.b16 %v1760
        %v2056 = vunpack.c.l.b16 %v1761
        %v2057 = vunpack.c.l.b16 %v1762
        %v2058 = vunpack.c.l.b16 %v1763
        %v2059 = vunpack.c.l.b16 %v1764
        %v2060 = vunpack.c.l.b16 %v1765
        %v2061 = vunpack.c.l.b16 %v1766
        %v2062 = vunpack.c.l.b16 %v1767
        %v2063 = vunpack.c.l.b16 %v1768
        %v2064 = vunpack.c.l.b16 %v1769
        %v2065 = vunpack.c.l.b16 %v1770
        %v2066 = vunpack.c.l.b16 %v1771
        %v2067 = vunpack.c.l.b16 %v1772
        %v2068 = vunpack.c.l.b16 %v1773
        %v2069 = vunpack.c.l.b16 %v1774
        %v2070 = vunpack.c.l.b16 %v1775
        %v2071 = vunpack.c.l.b16 %v1776
        %v2072 = vunpack.c.l.b16 %v1777
        %v2073 = vunpack.c.l.b16 %v1778
        %v2074 = vunpack.c.l.b16 %v1779
        %v2075 = vunpack.c.l.b16 %v1780
        %v2076 = vunpack.c.l.b16 %v1781
        %v2077 = vunpack.c.l.b16 %v1782
        %v2078 = vunpack.c.l.b16 %v1783
        %v2079 = vunpack.c.l.b16 %v1784
        %v2080 = vunpack.c.l.b16 %v1785
        %v2081 = vunpack.c.l.b16 %v1786
        %v2082 = vunpack.c.l.b16 %v1787
        %v2083 = vunpack.c.l.b16 %v1788
        %v2084 = vunpack.c.l.b16 %v1789
        %v2085 = vunpack.c.l.b16 %v1790
        %v2086 = vunpack.c.l.b16 %v1791
        %v2087 = vunpack.c.l.b16 %v1792
        %v2088 = vunpack.c.l.b16 %v1793
        %v2089 = vunpack.c.l.b16 %v1794
        %v2090 = vunpack.c.l.b16 %v1795
        %v2091 = vunpack.c.l.b16 %v1796
        %v2092 = vunpack.c.l.b16 %v1797
        %v2093 = vunpack.c.l.b16 %v1798
        %v2094 = vunpack.c.l.b16 %v1799
        %v2095 = vunpack.c.l.b16 %v1800
        %v2096 = vunpack.c.l.b16 %v1801
        %v2097 = vunpack.c.l.b16 %v1802
        %v2098 = vunpack.c.l.b16 %v1803
        %v2099 = vunpack.c.l.b16 %v1804
        %v2100 = vunpack.c.l.b16 %v1805
        %v2101 = vunpack.c.l.b16 %v1806
        %v2102 = vunpack.c.l.b16 %v1807
        %v2103 = vunpack.c.l.b16 %v1808
        %v2104 = vunpack.c.l.b16 %v1809
        %v2105 = vunpack.c.l.b16 %v1810
        %v2106 = vunpack.c.l.b16 %v1811
        %v2107 = vunpack.c.l.b16 %v1812
        %v2108 = vunpack.c.l.b16 %v1813
        %v2109 = vunpack.c.l.b16 %v1814
        %v2110 = vunpack.c.l.b16 %v1815
        %v2111 = vunpack.c.l.b16 %v1816
        %v2112 = vunpack.c.l.b16 %v1817
        %v2113 = vunpack.c.l.b16 %v1818
        %v2114 = vunpack.c.l.b16 %v1819
        %v2115 = vunpack.c.l.b16 %v1820
        %v2116 = vunpack.c.l.b16 %v1821
        %v2117 = vunpack.c.l.b16 %v1822
        %v2118 = vunpack.c.l.b16 %v1823
        %v2119 = vunpack.c.l.b16 %v1824
        %v2120 = vunpack.c.l.b16 %v1825
        %v2121 = vunpack.c.l.b16 %v1826
        %v2122 = vunpack.c.l.b16 %v1827
        %v2123 = vunpack.c.l.b16 %v1828
        %v2124 = vunpack.c.l.b16 %v1829
        %v2125 = vunpack.c.l.b16 %v1830
        %v2126 = vunpack.c.l.b16 %v1831
        %v2127 = vunpack.c.l.b16 %v1832
        %v2128 = vpack.c.b16 %v1985, %v1984
        %v2129 = vpack.c.b16 %v1987, %v1986
        %v2130 = vpack.c.b16 %v1989, %v1988
        %v2131 = vpack.c.b16 %v1991, %v1990
        %v2132 = vpack.c.b16 %v1993, %v1992
        %v2133 = vpack.c.b16 %v1995, %v1994
        %v2134 = vpack.c.b16 %v1997, %v1996
        %v2135 = vpack.c.b16 %v1999, %v1998
        %v2136 = vpack.c.b16 %v2001, %v2000
        %v2137 = vpack.c.b16 %v2003, %v2002
        %v2138 = vpack.c.b16 %v2005, %v2004
        %v2139 = vpack.c.b16 %v2007, %v2006
        %v2140 = vpack.c.b16 %v2009, %v2008
        %v2141 = vpack.c.b16 %v2011, %v2010
        %v2142 = vpack.c.b16 %v2013, %v2012
        %v2143 = vpack.c.b16 %v2015, %v2014
        %v2144 = vpack.c.b16 %v2017, %v2016
        %v2145 = vpack.c.b16 %v2019, %v2018
        %v2146 = vpack.c.b16 %v2021, %v2020
        %v2147 = vpack.c.b16 %v2023, %v2022
        %v2148 = vpack.c.b16 %v2025, %v2024
        %v2149 = vpack.c.b16 %v2027, %v2026
        %v2150 = vpack.c.b16 %v2029, %v2028
        %v2151 = vpack.c.b16 %v2031, %v2030
        %v2152 = vpack.c.b16 %v2033, %v2032
        %v2153 = vpack.c.b16 %v2035, %v2034
        %v2154 = vpack.c.b16 %v2037, %v2036
        %v2155 = vpack.c.b16 %v2039, %v2038
        %v2156 = vpack.c.b16 %v2041, %v2040
        %v2157 = vpack.c.b16 %v2043, %v2042
        %v2158 = vpack.c.b16 %v2045, %v2044
        %v2159 = vpack.c.b16 %v2047, %v2046
        %v2160 = vpack.c.b16 %v2049, %v2048
        %v2161 = vpack.c.b16 %v2051, %v2050
        %v2162 = vpack.c.b16 %v2053, %v2052
        %v2163 = vpack.c.b16 %v2055, %v2054
        %v2164 = vpack.c.b16 %v2057, %v2056
        %v2165 = vpack.c.b16 %v2059, %v2058
        %v2166 = vpack.c.b16 %v2061, %v2060
        %v2167 = vpack.c.b16 %v2063, %v2062
        %v2168 = vpack.c.b16 %v2065, %v2064
        %v2169 = vpack.c.b16 %v2067, %v2066
        %v2170 = vpack.c.b16 %v2069, %v2068
        %v2171 = vpack.c.b16 %v2071, %v2070
        %v2172 = vpack.c.b16 %v2073, %v2072
        %v2173 = vpack.c.b16 %v2075, %v2074
        %v2174 = vpack.c.b16 %v2077, %v2076
        %v2175 = vpack.c.b16 %v2079, %v2078
        %v2176 = vpack.c.b16 %v2081, %v2080
        %v2177 = vpack.c.b16 %v2083, %v2082
        %v2178 = vpack.c.b16 %v2085, %v2084
        %v2179 = vpack.c.b16 %v2087, %v2086
        %v2180 = vpack.c.b16 %v2089, %v2088
        %v2181 = vpack.c.b16 %v2091, %v2090
        %v2182 = vpack.c.b16 %v2093, %v2092
        %v2183 = vpack.c.b16 %v2095, %v2094
        %v2184 = vpack.c.b16 %v2097, %v2096
        %v2185 = vpack.c.b16 %v2099, %v2098
        %v2186 = vpack.c.b16 %v2101, %v2100
        %v2187 = vpack.c.b16 %v2103, %v2102
        %v2188 = vpack.c.b16 %v2105, %v2104
        %v2189 = vpack.c.b16 %v2107, %v2106
        %v2190 = vpack.c.b16 %v2109, %v2108
        %v2191 = vpack.c.b16 %v2111, %v2110
        %v2192 = vpack.c.b16 %v2113, %v2112
        %v2193 = vpack.c.b16 %v2115, %v2114
        %v2194 = vpack.c.b16 %v2117, %v2116
        %v2195 = vpack.c.b16 %v2119, %v2118
        %v2196 = vpack.c.b16 %v2121, %v2120
        %v2197 = vpack.c.b16 %v2123, %v2122
        %v2198 = vpack.c.b16 %v2125, %v2124
        %v2199 = vpack.c.b16 %v2127, %v2126
        %2272 = vmatprep.subr.bf16.mxu0 0
        %2273 = vmatpush1.bf16.msra.mxu0 %v2128
        %2274 = vmatprep.subr.bf16.mxu0 0
        %2275 = vmatpush1.bf16.msra.mxu0 %v2129
        %2276 = vmatprep.subr.bf16.mxu0 0
        %2277 = vmatpush1.bf16.msra.mxu0 %v2130
        %2278 = vmatprep.subr.bf16.mxu0 0
        %2279 = vmatpush1.bf16.msra.mxu0 %v2131
        %2280 = vmatprep.subr.bf16.mxu0 0
        %2281 = vmatpush1.bf16.msra.mxu0 %v2132
        %2282 = vmatprep.subr.bf16.mxu0 0
        %2283 = vmatpush1.bf16.msra.mxu0 %v2133
        %2284 = vmatprep.subr.bf16.mxu0 0
        %2285 = vmatpush1.bf16.msra.mxu0 %v2134
        %2286 = vmatprep.subr.bf16.mxu0 0
        %2287 = vmatpush1.bf16.msra.mxu0 %v2135
        %2288 = vmatprep.subr.bf16.mxu0 0
        %2289 = vmatpush1.bf16.msra.mxu0 %v2136
        %2290 = vmatprep.subr.bf16.mxu0 0
        %2291 = vmatpush1.bf16.msra.mxu0 %v2137
        %2292 = vmatprep.subr.bf16.mxu0 0
        %2293 = vmatpush1.bf16.msra.mxu0 %v2138
        %2294 = vmatprep.subr.bf16.mxu0 0
        %2295 = vmatpush1.bf16.msra.mxu0 %v2139
        %2296 = vmatprep.subr.bf16.mxu0 0
        %2297 = vmatpush1.bf16.msra.mxu0 %v2140
        %2298 = vmatprep.subr.bf16.mxu0 0
        %2299 = vmatpush1.bf16.msra.mxu0 %v2141
        %2300 = vmatprep.subr.bf16.mxu0 0
        %2301 = vmatpush1.bf16.msra.mxu0 %v2142
        %2302 = vmatprep.subr.bf16.mxu0 0
        %2303 = vmatpush1.bf16.msra.mxu0 %v2143
        %2304 = vmatprep.mubr.bf16.mxu0 %v1681
        %2305 = vmatmul.mubr.bf16.gmra.mrb[0].mxu0 %v1680
        %v2306 = vpop.f32.mrb[0].mxu0
        %v2307 = vadd.f32 %v1838, %v2306
        %v2308 = vpop.f32.mrb[0].mxu0
        %v2309 = vpop.f32.mrb[0].mxu0
        %v2310 = vadd.f32 %v1838, %v2309
        %v2311 = vpop.f32.mrb[0].mxu0
        %2312 = vdwg.mxu0
        %2313 = vmatprep.subr.bf16.mxu0 0
        %2314 = vmatpush1.bf16.msra.mxu0 %v2144
        %2315 = vmatprep.subr.bf16.mxu0 0
        %2316 = vmatpush1.bf16.msra.mxu0 %v2145
        %2317 = vmatprep.subr.bf16.mxu0 0
        %2318 = vmatpush1.bf16.msra.mxu0 %v2146
        %2319 = vmatprep.subr.bf16.mxu0 0
        %2320 = vmatpush1.bf16.msra.mxu0 %v2147
        %2321 = vmatprep.subr.bf16.mxu0 0
        %2322 = vmatpush1.bf16.msra.mxu0 %v2148
        %2323 = vmatprep.subr.bf16.mxu0 0
        %2324 = vmatpush1.bf16.msra.mxu0 %v2149
        %2325 = vmatprep.subr.bf16.mxu0 0
        %2326 = vmatpush1.bf16.msra.mxu0 %v2150
        %2327 = vmatprep.subr.bf16.mxu0 0
        %2328 = vmatpush1.bf16.msra.mxu0 %v2151
        %2329 = vmatprep.subr.bf16.mxu0 0
        %2330 = vmatpush1.bf16.msra.mxu0 %v2152
        %2331 = vmatprep.subr.bf16.mxu0 0
        %2332 = vmatpush1.bf16.msra.mxu0 %v2153
        %2333 = vmatprep.subr.bf16.mxu0 0
        %2334 = vmatpush1.bf16.msra.mxu0 %v2154
        %2335 = vmatprep.subr.bf16.mxu0 0
        %2336 = vmatpush1.bf16.msra.mxu0 %v2155
        %2337 = vmatprep.subr.bf16.mxu0 0
        %2338 = vmatpush1.bf16.msra.mxu0 %v2156
        %2339 = vmatprep.subr.bf16.mxu0 0
        %2340 = vmatpush1.bf16.msra.mxu0 %v2157
        %2341 = vmatprep.subr.bf16.mxu0 0
        %2342 = vmatpush1.bf16.msra.mxu0 %v2158
        %2343 = vmatprep.subr.bf16.mxu0 0
        %2344 = vmatpush1.bf16.msra.mxu0 %v2159
        %2345 = vmatprep.mubr.bf16.mxu0 %v1683
        %2346 = vmatmul.mubr.bf16.gmra.mrb[0].mxu0 %v1682
        %v2347 = vpop.f32.mrb[0].mxu0
        %v2348 = vadd.f32 %v2307, %v2347
        %v2349 = vpop.f32.mrb[0].mxu0
        %v2350 = vpop.f32.mrb[0].mxu0
        %v2351 = vadd.f32 %v2310, %v2350
        %v2352 = vpop.f32.mrb[0].mxu0
        %2353 = vdwg.mxu0
        %2354 = vmatprep.subr.bf16.mxu0 0
        %2355 = vmatpush1.bf16.msra.mxu0 %v2160
        %2356 = vmatprep.subr.bf16.mxu0 0
        %2357 = vmatpush1.bf16.msra.mxu0 %v2161
        %2358 = vmatprep.subr.bf16.mxu0 0
        %2359 = vmatpush1.bf16.msra.mxu0 %v2162
        %2360 = vmatprep.subr.bf16.mxu0 0
        %2361 = vmatpush1.bf16.msra.mxu0 %v2163
        %2362 = vmatprep.subr.bf16.mxu0 0
        %2363 = vmatpush1.bf16.msra.mxu0 %v2164
        %2364 = vmatprep.subr.bf16.mxu0 0
        %2365 = vmatpush1.bf16.msra.mxu0 %v2165
        %2366 = vmatprep.subr.bf16.mxu0 0
        %2367 = vmatpush1.bf16.msra.mxu0 %v2166
        %2368 = vmatprep.subr.bf16.mxu0 0
        %2369 = vmatpush1.bf16.msra.mxu0 %v2167
        %2370 = vmatprep.subr.bf16.mxu0 0
        %2371 = vmatpush1.bf16.msra.mxu0 %v2168
        %2372 = vmatprep.subr.bf16.mxu0 0
        %2373 = vmatpush1.bf16.msra.mxu0 %v2169
        %2374 = vmatprep.subr.bf16.mxu0 0
        %2375 = vmatpush1.bf16.msra.mxu0 %v2170
        %2376 = vmatprep.subr.bf16.mxu0 0
        %2377 = vmatpush1.bf16.msra.mxu0 %v2171
        %2378 = vmatprep.subr.bf16.mxu0 0
        %2379 = vmatpush1.bf16.msra.mxu0 %v2172
        %2380 = vmatprep.subr.bf16.mxu0 0
        %2381 = vmatpush1.bf16.msra.mxu0 %v2173
        %2382 = vmatprep.subr.bf16.mxu0 0
        %2383 = vmatpush1.bf16.msra.mxu0 %v2174
        %2384 = vmatprep.subr.bf16.mxu0 0
        %2385 = vmatpush1.bf16.msra.mxu0 %v2175
        %2386 = vmatprep.mubr.bf16.mxu0 %v1685
        %2387 = vmatmul.mubr.bf16.gmra.mrb[0].mxu0 %v1684
        %v2388 = vpop.f32.mrb[0].mxu0
        %v2389 = vadd.f32 %v2348, %v2388
        %v2390 = vpop.f32.mrb[0].mxu0
        %v2391 = vpop.f32.mrb[0].mxu0
        %v2392 = vadd.f32 %v2351, %v2391
        %v2393 = vpop.f32.mrb[0].mxu0
        %2394 = vdwg.mxu0
        %2395 = vmatprep.subr.bf16.mxu0 0
        %2396 = vmatpush1.bf16.msra.mxu0 %v2176
        %2397 = vmatprep.subr.bf16.mxu0 0
        %2398 = vmatpush1.bf16.msra.mxu0 %v2177
        %2399 = vmatprep.subr.bf16.mxu0 0
        %2400 = vmatpush1.bf16.msra.mxu0 %v2178
        %2401 = vmatprep.subr.bf16.mxu0 0
        %2402 = vmatpush1.bf16.msra.mxu0 %v2179
        %2403 = vmatprep.subr.bf16.mxu0 0
        %2404 = vmatpush1.bf16.msra.mxu0 %v2180
        %2405 = vmatprep.subr.bf16.mxu0 0
        %2406 = vmatpush1.bf16.msra.mxu0 %v2181
        %2407 = vmatprep.subr.bf16.mxu0 0
        %2408 = vmatpush1.bf16.msra.mxu0 %v2182
        %2409 = vmatprep.subr.bf16.mxu0 0
        %2410 = vmatpush1.bf16.msra.mxu0 %v2183
        %2411 = vmatprep.subr.bf16.mxu0 0
        %2412 = vmatpush1.bf16.msra.mxu0 %v2184
        %2413 = vmatprep.subr.bf16.mxu0 0
        %2414 = vmatpush1.bf16.msra.mxu0 %v2185
        %2415 = vmatprep.subr.bf16.mxu0 0
        %2416 = vmatpush1.bf16.msra.mxu0 %v2186
        %2417 = vmatprep.subr.bf16.mxu0 0
        %2418 = vmatpush1.bf16.msra.mxu0 %v2187
        %2419 = vmatprep.subr.bf16.mxu0 0
        %2420 = vmatpush1.bf16.msra.mxu0 %v2188
        %2421 = vmatprep.subr.bf16.mxu0 0
        %2422 = vmatpush1.bf16.msra.mxu0 %v2189
        %2423 = vmatprep.subr.bf16.mxu0 0
        %2424 = vmatpush1.bf16.msra.mxu0 %v2190
        %2425 = vmatprep.subr.bf16.mxu0 0
        %2426 = vmatpush1.bf16.msra.mxu0 %v2191
        %2427 = vmatprep.mubr.bf16.mxu0 %v1687
        %2428 = vmatmul.mubr.bf16.gmra.mrb[0].mxu0 %v1686
        %v2429 = vpop.f32.mrb[0].mxu0
        %v2430 = vadd.f32 %v2389, %v2429
        %v2431 = vpop.f32.mrb[0].mxu0
        %v2432 = vpop.f32.mrb[0].mxu0
        %v2433 = vadd.f32 %v2392, %v2432
        %v2434 = vpop.f32.mrb[0].mxu0
        %2435 = vdwg.mxu0
        %2436 = vmatprep.subr.bf16.mxu0 0
        %2437 = vmatpush1.bf16.msra.mxu0 %v2192
        %2438 = vmatprep.subr.bf16.mxu0 0
        %2439 = vmatpush1.bf16.msra.mxu0 %v2193
        %2440 = vmatprep.subr.bf16.mxu0 0
        %2441 = vmatpush1.bf16.msra.mxu0 %v2194
        %2442 = vmatprep.subr.bf16.mxu0 0
        %2443 = vmatpush1.bf16.msra.mxu0 %v2195
        %2444 = vmatprep.subr.bf16.mxu0 0
        %2445 = vmatpush1.bf16.msra.mxu0 %v2196
        %2446 = vmatprep.subr.bf16.mxu0 0
        %2447 = vmatpush1.bf16.msra.mxu0 %v2197
        %2448 = vmatprep.subr.bf16.mxu0 0
        %2449 = vmatpush1.bf16.msra.mxu0 %v2198
        %2450 = vmatprep.subr.bf16.mxu0 0
        %2451 = vmatpush1.bf16.msra.mxu0 %v2199
        %2452 = vmatprep.subr.bf16.mxu0 0
        %2453 = vmatpush1.bf16.msra.mxu0 0
        %2454 = vmatprep.subr.bf16.mxu0 0
        %2455 = vmatpush1.bf16.msra.mxu0 0
        %2456 = vmatprep.subr.bf16.mxu0 0
        %2457 = vmatpush1.bf16.msra.mxu0 0
        %2458 = vmatprep.subr.bf16.mxu0 0
        %2459 = vmatpush1.bf16.msra.mxu0 0
        %2460 = vmatprep.subr.bf16.mxu0 0
        %2461 = vmatpush1.bf16.msra.mxu0 0
        %2462 = vmatprep.subr.bf16.mxu0 0
        %2463 = vmatpush1.bf16.msra.mxu0 0
        %2464 = vmatprep.subr.bf16.mxu0 0
        %2465 = vmatpush1.bf16.msra.mxu0 0
        %2466 = vmatprep.subr.bf16.mxu0 0
        %2467 = vmatpush1.bf16.msra.mxu0 0
        %2468 = vmatprep.mubr.bf16.mxu0 0
        %2469 = vmatmul.mubr.bf16.gmra.mrb[0].mxu0 %v1688
        %v2470 = vpop.f32.mrb[0].mxu0
        %v2471 = vadd.f32 %v2430, %v2470
        %v2472 = vpop.f32.mrb[0].mxu0
        %v2473 = vpop.f32.mrb[0].mxu0
        %v2474 = vadd.f32 %v2433, %v2473
        %v2475 = vpop.f32.mrb[0].mxu0
        %2476 = vdwg.mxu0
        %v2479 = vcombine.high %v2471, %v2471
        %v2480 = vcombine.high %v2474, %v2474
        %2483 = vst [vmem:[%s255] sm:$0xf] %v2471
        %2484 = vst [vmem:[%s255 + $0x4] sm:$0xf] %v2479
        %2485 = vst [vmem:[%s255 + $0x8] sm:$0xf] %v2474
        %2486 = vst [vmem:[%s255 + $0xc] sm:$0xf] %v2480
        %s2487 = sand.u32 %s142, 1
        %s2488 = scalar_lea.sflag [#allocation5], %s2487
        %s2489 = sand.u32 %s142, 1
        %s2490 = smul.addr %s2489, 64
        %s2491 = scalar_lea.vmem [#allocation4], %s2490
        %s2492 = sand.u32 %s168, 1
        %s2493 = scalar_lea.sflag [#allocation7], %s2492
        %s2494 = sand.u32 %s168, 1
        %s2495 = smul.addr %s2494, 16
        %s2496 = scalar_lea.vmem [#allocation6], %s2495
        // Predicated region
        $region41: #{last_level_p6p7_pallas.1} parent=39 // pred_check
          %p2497 = pneg %p152
        $region42: #{last_level_p6p7_pallas.1} parent=39 // pred_check_branch
          %2499 = sbr.rel (%p2497) target = $region44
        $region43: #{last_level_p6p7_pallas.1} parent=39 // pred_region
          %s2501 = ssub.s32 1024, 1024
          %2502 = vsyncadd %s2488, %s2501
          %s2503 = smul.addr %s24, 8
          %s2504 = smul.addr %s2503, 128
          %s2505 = scalar_lea.hbm %s5, %s2504
          %s2506 = sshll.u32 %s2491, 4
          %s2507 = int_to_ptr.vmem [resolvable:$true] %s2506
          %2512 = dma.vmem_to_hbm [thread:$0]  %s2507, 1024, %s2505, %s2488, 128, 128, 8
        $region44: #{last_level_p6p7_pallas.1} parent=39 // pred_fallthru
          _
        // Predicated region
        $region45: #{last_level_p6p7_pallas.1} parent=39 // pred_check
          %p2513 = pneg %p178
        $region46: #{last_level_p6p7_pallas.1} parent=39 // pred_check_branch
          %2515 = sbr.rel (%p2513) target = $region48
        $region47: #{last_level_p6p7_pallas.1} parent=39 // pred_region
          %s2517 = ssub.s32 256, 256
          %2518 = vsyncadd %s2493, %s2517
          %s2519 = smul.addr %s24, 4
          %s2520 = smul.addr %s2519, 64
          %s2521 = scalar_lea.hbm %s6, %s2520
          %s2522 = sshll.u32 %s2496, 4
          %s2523 = int_to_ptr.vmem [resolvable:$true] %s2522
          %2528 = dma.vmem_to_hbm [thread:$0]  %s2523, 256, %s2521, %s2493, 64, 64, 4
        $region48: #{last_level_p6p7_pallas.1} parent=39 // pred_fallthru
          _
      $region40: #{last_level_p6p7_pallas.1} parent=5 // pred_fallthru
        _
      %p2529 = scmp.le.s32.totalorder 2, %s19
      // Predicated region
      $region49: #{last_level_p6p7_pallas.1} parent=5 // pred_check
        %p2530 = pneg %p2529
      $region50: #{last_level_p6p7_pallas.1} parent=5 // pred_check_branch
        %2532 = sbr.rel (%p2530) target = $region52
      $region51: #{last_level_p6p7_pallas.1} parent=5 // pred_region
        %s2533 = ssub.s32 %s19, 2
        // Predicated region
        $region53: #{last_level_p6p7_pallas.1} parent=51 // pred_check
          %p2534 = pneg %p158
        $region54: #{last_level_p6p7_pallas.1} parent=51 // pred_check_branch
          %2536 = sbr.rel (%p2534) target = $region56
        $region55: #{last_level_p6p7_pallas.1} parent=51 // pred_region
          %s2537 = sand.u32 %s143, 1
          %s2538 = scalar_lea.sflag [#allocation5], %s2537
          %s2539 = sand.u32 %s143, 1
          %s2540 = smul.addr %s2539, 64
          %s2541 = scalar_lea.vmem [#allocation4], %s2540
          %2542 = dma.done %s2538, 1024
        $region56: #{last_level_p6p7_pallas.1} parent=51 // pred_fallthru
          _
        // Predicated region
        $region57: #{last_level_p6p7_pallas.1} parent=51 // pred_check
          %p2543 = pneg %p184
        $region58: #{last_level_p6p7_pallas.1} parent=51 // pred_check_branch
          %2545 = sbr.rel (%p2543) target = $region60
        $region59: #{last_level_p6p7_pallas.1} parent=51 // pred_region
          %s2546 = sand.u32 %s169, 1
          %s2547 = scalar_lea.sflag [#allocation7], %s2546
          %s2548 = sand.u32 %s169, 1
          %s2549 = smul.addr %s2548, 16
          %s2550 = scalar_lea.vmem [#allocation6], %s2549
          %2551 = dma.done %s2547, 256
        $region60: #{last_level_p6p7_pallas.1} parent=51 // pred_fallthru
          _
      $region52: #{last_level_p6p7_pallas.1} parent=5 // pred_fallthru
        _
    $region6: #{last_level_p6p7_pallas.1} parent=1 // loop_footer
      %s23 = sadd.s32 1, %s19
    $region7: #{last_level_p6p7_pallas.1} parent=1 // loop_footer_branch
      %18 = sbr.rel target = $region3
    $region8: #{last_level_p6p7_pallas.1} parent=1 // loop_exit
      _
    %2552 = vsyncpa [#allocation5], 1
    %s2553 = scalar_lea.sflag [#allocation5], 1
    %2554 = vsyncpa %s2553, 1
    %2555 = vsyncpa [#allocation7], 1
    %s2556 = scalar_lea.sflag [#allocation7], 1
    %2557 = vsyncpa %s2556, 1

</llo_original>
